<compile_context>
chip_gen: v7x
topology: tpu7x:2x2x1
jax: 0.10.0
libtpu: 0.0.40
codegen_flags: <defaults>
</compile_context>

<pallas_src>
import functools
import numpy as np
import jax
import jax.numpy as jnp
from jax import lax
from jax.experimental import pallas as pl
from jax.experimental.pallas import tpu as pltpu

C_IN = 29      # in_nc
CH = 64        # channel
OUT_NC = 8     # out_nc
MAX_HW_TILE = 8192   # lane-dense HW rows per chunk (multiple of 128)


def _round_up(n, m):
    return (n + m - 1) // m * m


# --------------------------------------------------------------------------- #
# Pallas kernel: grid = (batch, HW chunk).  Tap sums accumulate across chunks;
# the MLP head runs once per image at the last chunk.
# --------------------------------------------------------------------------- #
def _hypanet_kernel(x_ref, m_ref, w1t_ref, b1c_ref, wk_ref, wmlp_ref, bmlp_ref,
                    o_ref, s_acc, s_flat, *, n_out, hw_valid, hw_tile, ragged):
    c = pl.program_id(1)

    @pl.when(c == 0)
    def _init():
        s_acc[...] = jnp.zeros_like(s_acc)

    # fution: 1x1 conv (29 -> 64) + bias + ReLU, transposed layout [CH, hw_tile].
    x = x_ref[0]                                                       # [C_IN, hw_tile]
    t = jnp.dot(w1t_ref[...], x, preferred_element_type=jnp.float32)   # [CH, hw_tile]
    t = jnp.maximum(t + b1c_ref[...], 0.0)                             # lane-broadcast bias

    if ragged:
        # HW is not a multiple of hw_tile and x is NOT padded in HBM: zero the lanes
        # past the true image size so OOB garbage never reaches the tap-sum dot.
        lane = lax.broadcasted_iota(jnp.int32, (1, hw_tile), 1)
        t = jnp.where(lane < (hw_valid - c * hw_tile), t, 0.0)

    # Partial strided-tap sums for the fused (3x3 s2 conv -> global avg pool).
    # Mask lives in HBM as int8 (values exactly 0/1) -> cast back is exact.
    m = m_ref[...].astype(jnp.float32)                                 # [9, hw_tile]
    s_acc[...] += lax.dot_general(                                     # contract HW lanes
        m, t, dimension_numbers=(((1,), (1,)), ((), ())),
        preferred_element_type=jnp.float32)                            # [9, CH]

    @pl.when(c == pl.num_programs(1) - 1)
    def _finalize():
        # Re-layout [9, CH] -> [1, 9*CH] with 9 static lane-slice stores, then do a
        # single fused K=576 MXU dot (replaces 9 serialized M=1 dots + drains).
        for k in range(9):
            s_flat[:, pl.ds(k * CH, CH)] = s_acc[pl.ds(k, 1), :]
        acc = jnp.dot(s_flat[...], wk_ref[...],
                      preferred_element_type=jnp.float32)              # [1, CH]
        pooled = acc * (1.0 / n_out) + bmlp_ref[pl.ds(0, 1), :]        # avg pool + conv bias

        # mlp: three 1x1 convs on a 1x1 spatial map == dense layers.
        h = jnp.maximum(jnp.dot(pooled, wmlp_ref[0],
                                preferred_element_type=jnp.float32)
                        + bmlp_ref[pl.ds(1, 1), :], 0.0)
        h = jnp.maximum(jnp.dot(h, wmlp_ref[1],
                                preferred_element_type=jnp.float32)
                        + bmlp_ref[pl.ds(2, 1), :], 0.0)
        z = jnp.dot(h, wmlp_ref[2],
                    preferred_element_type=jnp.float32) + bmlp_ref[pl.ds(3, 1), :]
        z = z[:, :OUT_NC]                                              # drop padded cols

        # Softplus (beta=1, threshold=20, matching torch.nn.Softplus) + 1e-6.
        sp = jnp.where(z > 20.0, z, jnp.log1p(jnp.exp(jnp.minimum(z, 20.0))))
        o_ref[...] = (sp + 1e-6)[None]                                 # [1, 1, OUT_NC]


# --------------------------------------------------------------------------- #
# Glue: mask construction, parameter init, wrapper, pure-JAX reference.
# --------------------------------------------------------------------------- #
def build_pool_mask(H, W, Ho, Wo, HW_pad):
    """M[3*di+dj, p*W+q] = 1 iff pixel (p,q) is tap (di,dj) of some conv output.

    Built with numpy at trace time (H, W static); int8 is exact for 0/1 and halves
    the mask HBM->VMEM traffic vs bf16.  Padded to HW_pad with zeros.
    """
    M = np.zeros((3, 3, H, W), dtype=np.int8)
    oi = np.arange(Ho)
    oj = np.arange(Wo)
    for di in range(3):
        rows = 2 * oi + di - 1
        rows = rows[(rows >= 0) & (rows < H)]
        for dj in range(3):
            cols = 2 * oj + dj - 1
            cols = cols[(cols >= 0) & (cols < W)]
            if rows.size and cols.size:
                M[di, dj][np.ix_(rows, cols)] = 1
    out = np.zeros((9, HW_pad), dtype=np.int8)
    out[:, :H * W] = M.reshape(9, H * W)
    return jnp.asarray(out)


def init_params(key):
    ks = jax.random.split(key, 10)

    def w(k, shape, scale=0.05):
        return (scale * jax.random.normal(k, shape)).astype(jnp.float32)

    # Wk[3*di+dj, cin, cout] corresponds to torch down_sample.weight[cout, cin, di, dj]
    return dict(
        W1=w(ks[0], (C_IN, CH)), b1=w(ks[1], (1, CH)),
        Wk=w(ks[2], (9, CH, CH)), b2=w(ks[3], (1, CH)),
        W3=w(ks[4], (CH, CH)),   b3=w(ks[5], (1, CH)),
        W4=w(ks[6], (CH, CH)),   b4=w(ks[7], (1, CH)),
        W5=w(ks[8], (CH, OUT_NC)), b5=w(ks[9], (1, OUT_NC)),
    )


def hypanet_forward(x, y, params):
    """x: [B, H, W], y: [B, C_IN-1, H, W] -> ([B, OUT_NC//2, 1, 1], [B, OUT_NC//2, 1, 1])"""
    B, H, W = x.shape
    Ho = (H + 2 - 3) // 2 + 1
    Wo = (W + 2 - 3) // 2 + 1
    HW = H * W

    # Lane-dense HW tiling (multiples of 128), capped so VMEM stays flat for big images.
    hw_tile = min(MAX_HW_TILE, _round_up(HW, 128))
    n_chunks = pl.cdiv(HW, hw_tile)
    HW_pad = n_chunks * hw_tile
    ragged = (HW % hw_tile) != 0      # x is never padded; tail handled in-kernel

    # torch.cat([x.unsqueeze(1), y], dim=1) in NCHW, then spatial flatten (free reshape,
    # NO transpose -> no extra HBM pass over the input).
    xcat = jnp.concatenate([x[:, None, :, :], y], axis=1).reshape(B, C_IN, HW)
    M = build_pool_mask(H, W, Ho, Wo, HW_pad)                          # int8 [9, HW_pad]

    # Parameter re-layout (tiny, trace-time):
    w1t = params['W1'].T                                               # [CH, C_IN]
    b1c = params['b1'].reshape(CH, 1)                                  # column for lane bcast
    wk2d = params['Wk'].reshape(9 * CH, CH)                            # [9*CH, CH]
    w5p = jnp.pad(params['W5'], ((0, 0), (0, CH - OUT_NC)))
    wmlp = jnp.stack([params['W3'], params['W4'], w5p], axis=0)        # [3, CH, CH]
    b5p = jnp.pad(params['b5'], ((0, 0), (0, CH - OUT_NC)))
    bmlp = jnp.concatenate([params['b2'], params['b3'],
                            params['b4'], b5p], axis=0)                # [4, CH]

    # Padding-aware VMEM accounting (sublanes pad to 8 f32 / 32 int8, lanes to 128).
    def rup(v, m):
        return _round_up(v, m)
    x_blk = rup(C_IN, 8) * hw_tile * 4            # f32 x block (double-buffered)
    m_blk = rup(9, 32) * hw_tile                  # int8 mask block
    t_tmp = CH * hw_tile * 4                      # conv1 output temp
    mf_tmp = rup(9, 8) * hw_tile * 4              # mask cast to f32 temp
    w_bytes = 4 * (CH * rup(C_IN, 128) + CH * 128 + 9 * CH * rup(CH, 128)
                   + 3 * CH * rup(CH, 128) + rup(4, 8) * rup(CH, 128))
    scratch_bytes = 4 * (rup(9, 8) * rup(CH, 128) + rup(9 * CH, 128))
    vmem_limit = int(2 * (x_blk + m_blk) + 2 * w_bytes + 2 * t_tmp + mf_tmp
                     + scratch_bytes + (4 << 20))
    vmem_limit = int(min(max(vmem_limit, 8 << 20), 96 << 20))

    flops = int(B * HW_pad * (2 * C_IN * CH + 2 * 9 * CH)
                + B * (2 * 9 * CH * CH + 4 * CH * CH + 2 * CH * OUT_NC))
    bytes_accessed = int(4 * B * C_IN * HW + B * 9 * HW_pad + w_bytes + 4 * B * OUT_NC)
    cost = pl.CostEstimate(flops=flops, transcendentals=int(B * OUT_NC),
                           bytes_accessed=bytes_accessed)

    kernel = functools.partial(_hypanet_kernel, n_out=Ho * Wo, hw_valid=HW,
                               hw_tile=hw_tile, ragged=ragged)
    wfull2 = lambda b, c: (0, 0)
    wfull3 = lambda b, c: (0, 0, 0)

    out = pl.pallas_call(
        kernel,
        out_shape=jax.ShapeDtypeStruct((B, 1, OUT_NC), jnp.float32),
        grid=(B, n_chunks),
        in_specs=[
            pl.BlockSpec((1, C_IN, hw_tile), lambda b, c: (b, 0, c)),  # x chunk (NCHW-flat)
            pl.BlockSpec((9, hw_tile), lambda b, c: (0, c)),           # int8 pooling mask
            pl.BlockSpec((CH, C_IN), wfull2),                          # fution weight (T)
            pl.BlockSpec((CH, 1), wfull2),                             # fution bias (column)
            pl.BlockSpec((9 * CH, CH), wfull2),                        # down_sample weight (flat)
            pl.BlockSpec((3, CH, CH), wfull3),                         # packed mlp weights
            pl.BlockSpec((4, CH), wfull2),                             # packed mlp/conv biases
        ],
        out_specs=pl.BlockSpec((1, 1, OUT_NC), lambda b, c: (b, 0, 0)),
        scratch_shapes=[pltpu.VMEM((9, CH), jnp.float32),        # tap-sum accumulator
                        pltpu.VMEM((1, 9 * CH), jnp.float32)],   # flattened tap sums
        compiler_params=pltpu.CompilerParams(
            dimension_semantics=("parallel", "arbitrary"),
            vmem_limit_bytes=vmem_limit),
        cost_estimate=cost,
    )(xcat, M, w1t, b1c, wk2d, wmlp, bmlp)

    half = OUT_NC // 2
    out = out[:, 0, :]                                                 # [B, OUT_NC]
    return (out[:, :half].reshape(B, half, 1, 1),
            out[:, half:].reshape(B, half, 1, 1))


def ref_forward(x, y, params):
    """Pure-JAX reference mirroring the PyTorch forward (f32 throughout)."""
    B = x.shape[0]
    xcat = jnp.concatenate([x[:, None, :, :], y], axis=1)              # [B, C_IN, H, W]
    t = jnp.einsum('bchw,cd->bdhw', xcat, params['W1']) + params['b1'][0][None, :, None, None]
    t = jnp.maximum(t, 0.0)
    w_oihw = jnp.transpose(params['Wk'].reshape(3, 3, CH, CH), (3, 2, 0, 1))
    conv = lax.conv_general_dilated(t, w_oihw, window_strides=(2, 2),
                                    padding=((1, 1), (1, 1)),
                                    dimension_numbers=('NCHW', 'OIHW', 'NCHW'))
    conv = conv + params['b2'][0][None, :, None, None]
    pooled = jnp.mean(conv, axis=(2, 3))                               # [B, CH]
    h = jnp.maximum(pooled @ params['W3'] + params['b3'], 0.0)
    h = jnp.maximum(h @ params['W4'] + params['b4'], 0.0)
    z = h @ params['W5'] + params['b5']
    sp = jnp.where(z > 20.0, z, jnp.log1p(jnp.exp(jnp.minimum(z, 20.0)))) + 1e-6
    half = OUT_NC // 2
    return (sp[:, :half].reshape(B, half, 1, 1),
            sp[:, half:].reshape(B, half, 1, 1))


if __name__ == "__main__":
    B, H, W = 2, 16, 16
    key = jax.random.PRNGKey(0)
    kx, ky, kp = jax.random.split(key, 3)
    x = jax.random.normal(kx, (B, H, W), dtype=jnp.float32)
    y = jax.random.normal(ky, (B, C_IN - 1, H, W), dtype=jnp.float32)
    params = init_params(kp)

    fwd = jax.jit(hypanet_forward)
    out1, out2 = fwd(x, y, params)
    jax.block_until_ready((out1, out2))

    r1, r2 = ref_forward(x, y, params)
    np.testing.assert_allclose(np.asarray(out1), np.asarray(r1), rtol=2e-4, atol=2e-5)
    np.testing.assert_allclose(np.asarray(out2), np.asarray(r2), rtol=2e-4, atol=2e-5)
    print("KERNEL_OK")
</pallas_src>

<mosaic_0001>
module attributes {stable_mosaic.version = 11 : i64} {
  func.func @_hypanet_kernel(%arg0: i32, %arg1: i32, %arg2: memref<1x29x256xf32, #tpu.memory_space<vmem>>, %arg3: memref<9x256xi8, #tpu.memory_space<vmem>>, %arg4: memref<64x29xf32, #tpu.memory_space<vmem>>, %arg5: memref<64x1xf32, #tpu.memory_space<vmem>>, %arg6: memref<576x64xf32, #tpu.memory_space<vmem>>, %arg7: memref<3x64x64xf32, #tpu.memory_space<vmem>>, %arg8: memref<4x64xf32, #tpu.memory_space<vmem>>, %arg9: memref<1x1x8xf32, #tpu.memory_space<vmem>>, %arg10: memref<9x64xf32, #tpu.memory_space<vmem>>, %arg11: memref<1x576xf32, #tpu.memory_space<vmem>>) attributes {dimension_semantics = [#tpu.dimension_semantics<parallel>, #tpu.dimension_semantics<arbitrary>], iteration_bounds = array<i64: 2, 1>, scalar_prefetch = 0 : i64, scratch_operands = 2 : i64, tpu.core_type = #tpu.core_type<tc>, window_params = [{transform_indices = @transform_0, window_bounds = array<i64: 1, 29, 256>}, {transform_indices = @transform_1, window_bounds = array<i64: 9, 256>}, {pipeline_mode = #tpu.pipeline_mode<synchronous>, transform_indices = @transform_2, window_bounds = array<i64: 64, 29>}, {pipeline_mode = #tpu.pipeline_mode<synchronous>, transform_indices = @transform_3, window_bounds = array<i64: 64, 1>}, {pipeline_mode = #tpu.pipeline_mode<synchronous>, transform_indices = @transform_4, window_bounds = array<i64: 576, 64>}, {pipeline_mode = #tpu.pipeline_mode<synchronous>, transform_indices = @transform_5, window_bounds = array<i64: 3, 64, 64>}, {pipeline_mode = #tpu.pipeline_mode<synchronous>, transform_indices = @transform_6, window_bounds = array<i64: 4, 64>}, {transform_indices = @transform_7, window_bounds = array<i64: 1, 1, 8>}]} {
    %c0_i32 = arith.constant 0 : i32
    %0 = arith.cmpi eq, %arg1, %c0_i32 : i32
    %1 = arith.extui %0 : i1 to i32
    %c0_i32_0 = arith.constant 0 : i32
    %2 = arith.cmpi ne, %1, %c0_i32_0 : i32
    scf.if %2 {
      %cst_17 = arith.constant 0.000000e+00 : f32
      %21 = vector.broadcast %cst_17 : f32 to vector<9x64xf32>
      %c0_18 = arith.constant 0 : index
      %c0_19 = arith.constant 0 : index
      %22 = vector.load %arg10[%c0_18, %c0_19] : memref<9x64xf32, #tpu.memory_space<vmem>>, vector<9x64xf32>
      tpu.vector_store %arg10[%c0_18, %c0_19], %21 {strides = array<i32>} : memref<9x64xf32, #tpu.memory_space<vmem>>, vector<9x64xf32>,
    } else {
    }
    %c0 = arith.constant 0 : index
    %c0_1 = arith.constant 0 : index
    %c0_2 = arith.constant 0 : index
    %3 = vector.load %arg2[%c0, %c0_1, %c0_2] : memref<1x29x256xf32, #tpu.memory_space<vmem>>, vector<1x29x256xf32>
    %4 = vector.shape_cast %3 : vector<1x29x256xf32> to vector<29x256xf32>
    %c0_3 = arith.constant 0 : index
    %c0_4 = arith.constant 0 : index
    %5 = vector.load %arg4[%c0_3, %c0_4] : memref<64x29xf32, #tpu.memory_space<vmem>>, vector<64x29xf32>
    %cst = arith.constant dense<0.000000e+00> : vector<64x256xf32>
    %6 = tpu.matmul %5, %4, %cst {dimension_numbers = #tpu.dot_dimension_numbers<[1], [0], [0], [1], [0, 0, 1, 1], [], []>} : vector<64x29xf32>, vector<29x256xf32>, vector<64x256xf32> -> vector<64x256xf32>
    %c0_5 = arith.constant 0 : index
    %c0_6 = arith.constant 0 : index
    %7 = vector.load %arg5[%c0_5, %c0_6] : memref<64x1xf32, #tpu.memory_space<vmem>>, vector<64x1xf32>
    %8 = vector.broadcast %7 : vector<64x1xf32> to vector<64x256xf32>
    %9 = arith.addf %6, %8 : vector<64x256xf32>
    %cst_7 = arith.constant 0.000000e+00 : f32
    %10 = vector.broadcast %cst_7 : f32 to vector<64x256xf32>
    %11 = arith.maximumf %9, %10 : vector<64x256xf32>
    %c0_8 = arith.constant 0 : index
    %c0_9 = arith.constant 0 : index
    %12 = vector.load %arg3[%c0_8, %c0_9] : memref<9x256xi8, #tpu.memory_space<vmem>>, vector<9x256xi8>
    %13 = arith.sitofp %12 : vector<9x256xi8> to vector<9x256xf32>
    %c0_10 = arith.constant 0 : index
    %c0_11 = arith.constant 0 : index
    %14 = vector.load %arg10[%c0_10, %c0_11] : memref<9x64xf32, #tpu.memory_space<vmem>>, vector<9x64xf32>
    %cst_12 = arith.constant dense<0.000000e+00> : vector<9x64xf32>
    %15 = tpu.matmul %13, %11, %cst_12 {dimension_numbers = #tpu.dot_dimension_numbers<[1], [1], [0], [0], [0, 0, 1, 0], [], []>} : vector<9x256xf32>, vector<64x256xf32>, vector<9x64xf32> -> vector<9x64xf32>
    %16 = arith.addf %14, %15 : vector<9x64xf32>
    %c0_13 = arith.constant 0 : index
    %c0_14 = arith.constant 0 : index
    %17 = vector.load %arg10[%c0_13, %c0_14] : memref<9x64xf32, #tpu.memory_space<vmem>>, vector<9x64xf32>
    tpu.vector_store %arg10[%c0_13, %c0_14], %16 {strides = array<i32>} : memref<9x64xf32, #tpu.memory_space<vmem>>, vector<9x64xf32>,
    %c0_i32_15 = arith.constant 0 : i32
    %18 = arith.cmpi eq, %arg1, %c0_i32_15 : i32
    %19 = arith.extui %18 : i1 to i32
    %c0_i32_16 = arith.constant 0 : i32
    %20 = arith.cmpi ne, %19, %c0_i32_16 : i32
    scf.if %20 {
      %c0_17 = arith.constant 0 : index
      %c0_18 = arith.constant 0 : index
      %21 = vector.load %arg10[%c0_17, %c0_18] : memref<9x64xf32, #tpu.memory_space<vmem>>, vector<1x64xf32>
      %c0_19 = arith.constant 0 : index
      %c0_20 = arith.constant 0 : index
      %22 = vector.load %arg11[%c0_19, %c0_20] : memref<1x576xf32, #tpu.memory_space<vmem>>, vector<1x64xf32>
      tpu.vector_store %arg11[%c0_19, %c0_20], %21 {strides = array<i32>} : memref<1x576xf32, #tpu.memory_space<vmem>>, vector<1x64xf32>,
      %c1 = arith.constant 1 : index
      %c0_21 = arith.constant 0 : index
      %23 = vector.load %arg10[%c1, %c0_21] : memref<9x64xf32, #tpu.memory_space<vmem>>, vector<1x64xf32>
      %c0_22 = arith.constant 0 : index
      %c64 = arith.constant 64 : index
      %24 = vector.load %arg11[%c0_22, %c64] : memref<1x576xf32, #tpu.memory_space<vmem>>, vector<1x64xf32>
      tpu.vector_store %arg11[%c0_22, %c64], %23 {strides = array<i32>} : memref<1x576xf32, #tpu.memory_space<vmem>>, vector<1x64xf32>,
      %c2 = arith.constant 2 : index
      %c0_23 = arith.constant 0 : index
      %25 = vector.load %arg10[%c2, %c0_23] : memref<9x64xf32, #tpu.memory_space<vmem>>, vector<1x64xf32>
      %c0_24 = arith.constant 0 : index
      %c128 = arith.constant 128 : index
      %26 = vector.load %arg11[%c0_24, %c128] : memref<1x576xf32, #tpu.memory_space<vmem>>, vector<1x64xf32>
      tpu.vector_store %arg11[%c0_24, %c128], %25 {strides = array<i32>} : memref<1x576xf32, #tpu.memory_space<vmem>>, vector<1x64xf32>,
      %c3 = arith.constant 3 : index
      %c0_25 = arith.constant 0 : index
      %27 = vector.load %arg10[%c3, %c0_25] : memref<9x64xf32, #tpu.memory_space<vmem>>, vector<1x64xf32>
      %c0_26 = arith.constant 0 : index
      %c192 = arith.constant 192 : index
      %28 = vector.load %arg11[%c0_26, %c192] : memref<1x576xf32, #tpu.memory_space<vmem>>, vector<1x64xf32>
      tpu.vector_store %arg11[%c0_26, %c192], %27 {strides = array<i32>} : memref<1x576xf32, #tpu.memory_space<vmem>>, vector<1x64xf32>,
      %c4 = arith.constant 4 : index
      %c0_27 = arith.constant 0 : index
      %29 = vector.load %arg10[%c4, %c0_27] : memref<9x64xf32, #tpu.memory_space<vmem>>, vector<1x64xf32>
      %c0_28 = arith.constant 0 : index
      %c256 = arith.constant 256 : index
      %30 = vector.load %arg11[%c0_28, %c256] : memref<1x576xf32, #tpu.memory_space<vmem>>, vector<1x64xf32>
      tpu.vector_store %arg11[%c0_28, %c256], %29 {strides = array<i32>} : memref<1x576xf32, #tpu.memory_space<vmem>>, vector<1x64xf32>,
      %c5 = arith.constant 5 : index
      %c0_29 = arith.constant 0 : index
      %31 = vector.load %arg10[%c5, %c0_29] : memref<9x64xf32, #tpu.memory_space<vmem>>, vector<1x64xf32>
      %c0_30 = arith.constant 0 : index
      %c320 = arith.constant 320 : index
      %32 = vector.load %arg11[%c0_30, %c320] : memref<1x576xf32, #tpu.memory_space<vmem>>, vector<1x64xf32>
      tpu.vector_store %arg11[%c0_30, %c320], %31 {strides = array<i32>} : memref<1x576xf32, #tpu.memory_space<vmem>>, vector<1x64xf32>,
      %c6 = arith.constant 6 : index
      %c0_31 = arith.constant 0 : index
      %33 = vector.load %arg10[%c6, %c0_31] : memref<9x64xf32, #tpu.memory_space<vmem>>, vector<1x64xf32>
      %c0_32 = arith.constant 0 : index
      %c384 = arith.constant 384 : index
      %34 = vector.load %arg11[%c0_32, %c384] : memref<1x576xf32, #tpu.memory_space<vmem>>, vector<1x64xf32>
      tpu.vector_store %arg11[%c0_32, %c384], %33 {strides = array<i32>} : memref<1x576xf32, #tpu.memory_space<vmem>>, vector<1x64xf32>,
      %c7 = arith.constant 7 : index
      %c0_33 = arith.constant 0 : index
      %35 = vector.load %arg10[%c7, %c0_33] : memref<9x64xf32, #tpu.memory_space<vmem>>, vector<1x64xf32>
      %c0_34 = arith.constant 0 : index
      %c448 = arith.constant 448 : index
      %36 = vector.load %arg11[%c0_34, %c448] : memref<1x576xf32, #tpu.memory_space<vmem>>, vector<1x64xf32>
      tpu.vector_store %arg11[%c0_34, %c448], %35 {strides = array<i32>} : memref<1x576xf32, #tpu.memory_space<vmem>>, vector<1x64xf32>,
      %c8 = arith.constant 8 : index
      %c0_35 = arith.constant 0 : index
      %37 = vector.load %arg10[%c8, %c0_35] : memref<9x64xf32, #tpu.memory_space<vmem>>, vector<1x64xf32>
      %c0_36 = arith.constant 0 : index
      %c512 = arith.constant 512 : index
      %38 = vector.load %arg11[%c0_36, %c512] : memref<1x576xf32, #tpu.memory_space<vmem>>, vector<1x64xf32>
      tpu.vector_store %arg11[%c0_36, %c512], %37 {strides = array<i32>} : memref<1x576xf32, #tpu.memory_space<vmem>>, vector<1x64xf32>,
      %c0_37 = arith.constant 0 : index
      %c0_38 = arith.constant 0 : index
      %39 = vector.load %arg11[%c0_37, %c0_38] : memref<1x576xf32, #tpu.memory_space<vmem>>, vector<1x576xf32>
      %c0_39 = arith.constant 0 : index
      %c0_40 = arith.constant 0 : index
      %40 = vector.load %arg6[%c0_39, %c0_40] : memref<576x64xf32, #tpu.memory_space<vmem>>, vector<576x64xf32>
      %cst_41 = arith.constant dense<0.000000e+00> : vector<1x64xf32>
      %41 = tpu.matmul %39, %40, %cst_41 {dimension_numbers = #tpu.dot_dimension_numbers<[1], [0], [0], [1], [0, 0, 1, 1], [], []>} : vector<1x576xf32>, vector<576x64xf32>, vector<1x64xf32> -> vector<1x64xf32>
      %cst_42 = arith.constant 1.562500e-02 : f32
      %42 = vector.broadcast %cst_42 : f32 to vector<1x64xf32>
      %43 = arith.mulf %41, %42 : vector<1x64xf32>
      %c0_43 = arith.constant 0 : index
      %c0_44 = arith.constant 0 : index
      %44 = vector.load %arg8[%c0_43, %c0_44] : memref<4x64xf32, #tpu.memory_space<vmem>>, vector<1x64xf32>
      %45 = arith.addf %43, %44 : vector<1x64xf32>
      %c0_45 = arith.constant 0 : index
      %c0_46 = arith.constant 0 : index
      %c0_47 = arith.constant 0 : index
      %46 = vector.load %arg7[%c0_45, %c0_46, %c0_47] : memref<3x64x64xf32, #tpu.memory_space<vmem>>, vector<1x64x64xf32>
      %47 = vector.shape_cast %46 : vector<1x64x64xf32> to vector<64x64xf32>
      %cst_48 = arith.constant dense<0.000000e+00> : vector<1x64xf32>
      %48 = tpu.matmul %45, %47, %cst_48 {dimension_numbers = #tpu.dot_dimension_numbers<[1], [0], [0], [1], [0, 0, 1, 1], [], []>} : vector<1x64xf32>, vector<64x64xf32>, vector<1x64xf32> -> vector<1x64xf32>
      %c1_49 = arith.constant 1 : index
      %c0_50 = arith.constant 0 : index
      %49 = vector.load %arg8[%c1_49, %c0_50] : memref<4x64xf32, #tpu.memory_space<vmem>>, vector<1x64xf32>
      %50 = arith.addf %48, %49 : vector<1x64xf32>
      %cst_51 = arith.constant 0.000000e+00 : f32
      %51 = vector.broadcast %cst_51 : f32 to vector<1x64xf32>
      %52 = arith.maximumf %50, %51 : vector<1x64xf32>
      %c1_52 = arith.constant 1 : index
      %c0_53 = arith.constant 0 : index
      %c0_54 = arith.constant 0 : index
      %53 = vector.load %arg7[%c1_52, %c0_53, %c0_54] : memref<3x64x64xf32, #tpu.memory_space<vmem>>, vector<1x64x64xf32>
      %54 = vector.shape_cast %53 : vector<1x64x64xf32> to vector<64x64xf32>
      %cst_55 = arith.constant dense<0.000000e+00> : vector<1x64xf32>
      %55 = tpu.matmul %52, %54, %cst_55 {dimension_numbers = #tpu.dot_dimension_numbers<[1], [0], [0], [1], [0, 0, 1, 1], [], []>} : vector<1x64xf32>, vector<64x64xf32>, vector<1x64xf32> -> vector<1x64xf32>
      %c2_56 = arith.constant 2 : index
      %c0_57 = arith.constant 0 : index
      %56 = vector.load %arg8[%c2_56, %c0_57] : memref<4x64xf32, #tpu.memory_space<vmem>>, vector<1x64xf32>
      %57 = arith.addf %55, %56 : vector<1x64xf32>
      %cst_58 = arith.constant 0.000000e+00 : f32
      %58 = vector.broadcast %cst_58 : f32 to vector<1x64xf32>
      %59 = arith.maximumf %57, %58 : vector<1x64xf32>
      %c2_59 = arith.constant 2 : index
      %c0_60 = arith.constant 0 : index
      %c0_61 = arith.constant 0 : index
      %60 = vector.load %arg7[%c2_59, %c0_60, %c0_61] : memref<3x64x64xf32, #tpu.memory_space<vmem>>, vector<1x64x64xf32>
      %61 = vector.shape_cast %60 : vector<1x64x64xf32> to vector<64x64xf32>
      %cst_62 = arith.constant dense<0.000000e+00> : vector<1x64xf32>
      %62 = tpu.matmul %59, %61, %cst_62 {dimension_numbers = #tpu.dot_dimension_numbers<[1], [0], [0], [1], [0, 0, 1, 1], [], []>} : vector<1x64xf32>, vector<64x64xf32>, vector<1x64xf32> -> vector<1x64xf32>
      %c3_63 = arith.constant 3 : index
      %c0_64 = arith.constant 0 : index
      %63 = vector.load %arg8[%c3_63, %c0_64] : memref<4x64xf32, #tpu.memory_space<vmem>>, vector<1x64xf32>
      %64 = arith.addf %62, %63 : vector<1x64xf32>
      %65 = vector.extract_strided_slice %64 {offsets = [0, 0], sizes = [1, 8], strides = [1, 1]} : vector<1x64xf32> to vector<1x8xf32>
      %cst_65 = arith.constant 2.000000e+01 : f32
      %66 = vector.broadcast %cst_65 : f32 to vector<1x8xf32>
      %67 = arith.cmpf ogt, %65, %66 : vector<1x8xf32>
      %cst_66 = arith.constant 2.000000e+01 : f32
      %68 = vector.broadcast %cst_66 : f32 to vector<1x8xf32>
      %69 = arith.minimumf %65, %68 : vector<1x8xf32>
      %70 = math.exp %69 : vector<1x8xf32>
      %71 = math.log1p %70 : vector<1x8xf32>
      %72 = arith.select %67, %65, %71 : vector<1x8xi1>, vector<1x8xf32>
      %cst_67 = arith.constant 9.99999997E-7 : f32
      %73 = vector.broadcast %cst_67 : f32 to vector<1x8xf32>
      %74 = arith.addf %72, %73 : vector<1x8xf32>
      %75 = vector.shape_cast %74 : vector<1x8xf32> to vector<1x1x8xf32>
      %c0_68 = arith.constant 0 : index
      %c0_69 = arith.constant 0 : index
      %c0_70 = arith.constant 0 : index
      %76 = vector.load %arg9[%c0_68, %c0_69, %c0_70] : memref<1x1x8xf32, #tpu.memory_space<vmem>>, vector<1x1x8xf32>
      tpu.vector_store %arg9[%c0_68, %c0_69, %c0_70], %75 {strides = array<i32>} : memref<1x1x8xf32, #tpu.memory_space<vmem>>, vector<1x1x8xf32>,
    } else {
    }
    return
  }
  func.func @transform_0(%arg0: i32, %arg1: i32) -> (i32, i32, i32) {
    %c0_i32 = arith.constant 0 : i32
    %c0_i32_0 = arith.constant 0 : i32
    return %arg0, %c0_i32, %arg1 : i32, i32, i32
  }
  func.func @transform_1(%arg0: i32, %arg1: i32) -> (i32, i32) {
    %c0_i32 = arith.constant 0 : i32
    %c0_i32_0 = arith.constant 0 : i32
    return %c0_i32, %arg1 : i32, i32
  }
  func.func @transform_2(%arg0: i32, %arg1: i32) -> (i32, i32) {
    %c0_i32 = arith.constant 0 : i32
    %c0_i32_0 = arith.constant 0 : i32
    %c0_i32_1 = arith.constant 0 : i32
    return %c0_i32, %c0_i32_0 : i32, i32
  }
  func.func @transform_3(%arg0: i32, %arg1: i32) -> (i32, i32) {
    %c0_i32 = arith.constant 0 : i32
    %c0_i32_0 = arith.constant 0 : i32
    %c0_i32_1 = arith.constant 0 : i32
    return %c0_i32, %c0_i32_0 : i32, i32
  }
  func.func @transform_4(%arg0: i32, %arg1: i32) -> (i32, i32) {
    %c0_i32 = arith.constant 0 : i32
    %c0_i32_0 = arith.constant 0 : i32
    %c0_i32_1 = arith.constant 0 : i32
    return %c0_i32, %c0_i32_0 : i32, i32
  }
  func.func @transform_5(%arg0: i32, %arg1: i32) -> (i32, i32, i32) {
    %c0_i32 = arith.constant 0 : i32
    %c0_i32_0 = arith.constant 0 : i32
    %c0_i32_1 = arith.constant 0 : i32
    %c0_i32_2 = arith.constant 0 : i32
    return %c0_i32, %c0_i32_0, %c0_i32_1 : i32, i32, i32
  }
  func.func @transform_6(%arg0: i32, %arg1: i32) -> (i32, i32) {
    %c0_i32 = arith.constant 0 : i32
    %c0_i32_0 = arith.constant 0 : i32
    %c0_i32_1 = arith.constant 0 : i32
    return %c0_i32, %c0_i32_0 : i32, i32
  }
  func.func @transform_7(%arg0: i32, %arg1: i32) -> (i32, i32, i32) {
    %c0_i32 = arith.constant 0 : i32
    %c0_i32_0 = arith.constant 0 : i32
    %c0_i32_1 = arith.constant 0 : i32
    return %arg0, %c0_i32, %c0_i32_0 : i32, i32, i32
  }
}

</mosaic_0001>

<llo_original>
// kernel: hypanet_forward.1
$region0: #{hypanet_forward.1}
  #allocation0 [shape = 'u32[]', space=smem, size = 0x4, offset = 0x4, fixed_abs, tag = 'smem constant byte address 0x4 - core index']
  #allocation1 [shape = 'u32[144,128]{1,0:T(1,128)}', space=vmem, size = 0x12000, scoped, tag = 'internal scratch']
  #allocation2 [shape = 'f32[9,64]{1,0:T(8,128)}', space=vmem, size = 0x2000, scoped, tag = 'scratch operand']
  #allocation3 [shape = 'f32[1,576]{1,0:T(1,128)}', space=vmem, size = 0xa00, scoped, tag = 'scratch operand']
  %s0 = inlined_call_operand.vmem [shape: f32[2,29,256], index: 0, kind: input, shape index: {}]
  %s1 = inlined_call_operand.vmem [shape: s8[9,256], index: 1, kind: input, shape index: {}]
  %s2 = inlined_call_operand.vmem [shape: f32[64,29], index: 2, kind: input, shape index: {}]
  %s3 = inlined_call_operand.vmem [shape: f32[64,1], index: 3, kind: input, shape index: {}]
  %s4 = inlined_call_operand.vmem [shape: f32[576,64], index: 4, kind: input, shape index: {}]
  %s5 = inlined_call_operand.vmem [shape: f32[3,64,64], index: 5, kind: input, shape index: {}]
  %s6 = inlined_call_operand.vmem [shape: f32[4,64], index: 6, kind: input, shape index: {}]
  %s7 = inlined_call_operand.vmem [shape: f32[2,1,8], index: 7, kind: output, shape index: {}]
  %s8 = sld [smem:[#allocation0]]
  $region69: #{hypanet_forward.1} parent=0
    _
  %s10 = ssub.s32 1, %s8
  %s11 = scalar_select 0, %s10, %s8
  loop: start=0, step=1, limit=4
  $region2: #{hypanet_forward.1} parent=0 // loop_pre_header
    _
  $region3: #{hypanet_forward.1} parent=0 // loop_header
    %s13 = sphi 0, %s17
    %p14 = scmp.ge.s32.totalorder %s13, 4
    %s20 = sphi 0, %s32
    %s21 = sphi 0, %s28
    %s22 = sphi 0, %s20
    %s23 = sphi 0, %s21
    %s24 = sphi 0, %s22
    %s25 = sphi 0, %s23
    %s37 = sphi 0, %s39
    %s40 = sphi 0, %s37
    %s41 = sphi 0, %s40
    %s57 = sphi 0, %s41
    %s63 = sphi 0, %s65
    %s66 = sphi 0, %s63
    %s67 = sphi 0, %s66
    %s83 = sphi 0, %s67
    %s87 = sphi 0, %s87
    %s89 = sphi 0, %s87
    %s90 = sphi 0, %s89
    %s104 = sphi 0, %s90
    %s108 = sphi 0, %s108
    %s110 = sphi 0, %s108
    %s111 = sphi 0, %s110
    %s125 = sphi 0, %s111
    %s129 = sphi 0, %s129
    %s131 = sphi 0, %s129
    %s132 = sphi 0, %s131
    %s146 = sphi 0, %s132
    %s150 = sphi 0, %s150
    %s152 = sphi 0, %s150
    %s153 = sphi 0, %s152
    %s167 = sphi 0, %s153
    %s171 = sphi 0, %s171
    %s173 = sphi 0, %s171
    %s174 = sphi 0, %s173
    %s188 = sphi 0, %s174
    %s194 = sphi 0, %s196
    %s197 = sphi 0, %s194
    %s198 = sphi 0, %s197
    %s214 = sphi 0, %s198
  $region4: #{hypanet_forward.1} parent=0 // loop_header_branch
    %16 = sbr.rel (%p14) target = $region8
  $region5: #{hypanet_forward.1} parent=0 // loop_body
    %s18 = ssub.s32 %s13, 1
    %s19 = ssub.s32 %s13, 2
    %s26 = sadd.s32 1, %s21
    %p27 = scmp.ge.s32.totalorder %s26, 1
    %s28 = scalar_select %p27, 0, %s26
    %s29 = sadd.s32 1, %s20
    %s30 = scalar_select %p27, %s29, %s20
    %p31 = scmp.ge.s32.totalorder %s30, 2
    %s32 = scalar_select %p31, 0, %s30
    %s33 = ssub.s32 %s20, %s32
    %s34 = ssub.s32 %s21, %s28
    %s35 = sor.u32 %s33, %s34
    %p36 = scmp.eq.s32.totalorder %s35, 0
    %s38 = sadd.s32 %s37, 1
    %s39 = scalar_select %p36, %s37, %s38
    %p42 = pneg %p36
    %p43 = scmp.eq.s32.totalorder %s13, 1
    %p44 = por %p42, %p43
    %p45 = scmp.ne.s32.totalorder %s37, %s40
    %p46 = scmp.eq.s32.totalorder %s13, 0
    %p47 = por %p45, %p46
    %p48 = scmp.ne.s32.totalorder %s37, %s40
    %p49 = scmp.eq.s32.totalorder %s18, 1
    %p50 = por %p48, %p49
    %p51 = scmp.ne.s32.totalorder %s40, %s41
    %p52 = scmp.eq.s32.totalorder %s18, 0
    %p53 = por %p51, %p52
    %p54 = scmp.ne.s32.totalorder %s40, %s41
    %p55 = scmp.eq.s32.totalorder %s19, 1
    %p56 = por %p54, %p55
    %p58 = scmp.ne.s32.totalorder %s41, %s57
    %p59 = scmp.eq.s32.totalorder %s19, 0
    %p60 = por %p58, %p59
    %s61 = ssub.s32 %s21, %s28
    %p62 = scmp.eq.s32.totalorder %s61, 0
    %s64 = sadd.s32 %s63, 1
    %s65 = scalar_select %p62, %s63, %s64
    %p68 = pneg %p62
    %p69 = scmp.eq.s32.totalorder %s13, 1
    %p70 = por %p68, %p69
    %p71 = scmp.ne.s32.totalorder %s63, %s66
    %p72 = scmp.eq.s32.totalorder %s13, 0
    %p73 = por %p71, %p72
    %p74 = scmp.ne.s32.totalorder %s63, %s66
    %p75 = scmp.eq.s32.totalorder %s18, 1
    %p76 = por %p74, %p75
    %p77 = scmp.ne.s32.totalorder %s66, %s67
    %p78 = scmp.eq.s32.totalorder %s18, 0
    %p79 = por %p77, %p78
    %p80 = scmp.ne.s32.totalorder %s66, %s67
    %p81 = scmp.eq.s32.totalorder %s19, 1
    %p82 = por %p80, %p81
    %p84 = scmp.ne.s32.totalorder %s67, %s83
    %p85 = scmp.eq.s32.totalorder %s19, 0
    %p86 = por %p84, %p85
    %s88 = sadd.s32 %s87, 1
    %p91 = scmp.eq.s32.totalorder %s13, 1
    %p92 = scmp.ne.s32.totalorder %s87, %s89
    %p93 = scmp.eq.s32.totalorder %s13, 0
    %p94 = por %p92, %p93
    %p95 = scmp.ne.s32.totalorder %s87, %s89
    %p96 = scmp.eq.s32.totalorder %s18, 1
    %p97 = por %p95, %p96
    %p98 = scmp.ne.s32.totalorder %s89, %s90
    %p99 = scmp.eq.s32.totalorder %s18, 0
    %p100 = por %p98, %p99
    %p101 = scmp.ne.s32.totalorder %s89, %s90
    %p102 = scmp.eq.s32.totalorder %s19, 1
    %p103 = por %p101, %p102
    %p105 = scmp.ne.s32.totalorder %s90, %s104
    %p106 = scmp.eq.s32.totalorder %s19, 0
    %p107 = por %p105, %p106
    %s109 = sadd.s32 %s108, 1
    %p112 = scmp.eq.s32.totalorder %s13, 1
    %p113 = scmp.ne.s32.totalorder %s108, %s110
    %p114 = scmp.eq.s32.totalorder %s13, 0
    %p115 = por %p113, %p114
    %p116 = scmp.ne.s32.totalorder %s108, %s110
    %p117 = scmp.eq.s32.totalorder %s18, 1
    %p118 = por %p116, %p117
    %p119 = scmp.ne.s32.totalorder %s110, %s111
    %p120 = scmp.eq.s32.totalorder %s18, 0
    %p121 = por %p119, %p120
    %p122 = scmp.ne.s32.totalorder %s110, %s111
    %p123 = scmp.eq.s32.totalorder %s19, 1
    %p124 = por %p122, %p123
    %p126 = scmp.ne.s32.totalorder %s111, %s125
    %p127 = scmp.eq.s32.totalorder %s19, 0
    %p128 = por %p126, %p127
    %s130 = sadd.s32 %s129, 1
    %p133 = scmp.eq.s32.totalorder %s13, 1
    %p134 = scmp.ne.s32.totalorder %s129, %s131
    %p135 = scmp.eq.s32.totalorder %s13, 0
    %p136 = por %p134, %p135
    %p137 = scmp.ne.s32.totalorder %s129, %s131
    %p138 = scmp.eq.s32.totalorder %s18, 1
    %p139 = por %p137, %p138
    %p140 = scmp.ne.s32.totalorder %s131, %s132
    %p141 = scmp.eq.s32.totalorder %s18, 0
    %p142 = por %p140, %p141
    %p143 = scmp.ne.s32.totalorder %s131, %s132
    %p144 = scmp.eq.s32.totalorder %s19, 1
    %p145 = por %p143, %p144
    %p147 = scmp.ne.s32.totalorder %s132, %s146
    %p148 = scmp.eq.s32.totalorder %s19, 0
    %p149 = por %p147, %p148
    %s151 = sadd.s32 %s150, 1
    %p154 = scmp.eq.s32.totalorder %s13, 1
    %p155 = scmp.ne.s32.totalorder %s150, %s152
    %p156 = scmp.eq.s32.totalorder %s13, 0
    %p157 = por %p155, %p156
    %p158 = scmp.ne.s32.totalorder %s150, %s152
    %p159 = scmp.eq.s32.totalorder %s18, 1
    %p160 = por %p158, %p159
    %p161 = scmp.ne.s32.totalorder %s152, %s153
    %p162 = scmp.eq.s32.totalorder %s18, 0
    %p163 = por %p161, %p162
    %p164 = scmp.ne.s32.totalorder %s152, %s153
    %p165 = scmp.eq.s32.totalorder %s19, 1
    %p166 = por %p164, %p165
    %p168 = scmp.ne.s32.totalorder %s153, %s167
    %p169 = scmp.eq.s32.totalorder %s19, 0
    %p170 = por %p168, %p169
    %s172 = sadd.s32 %s171, 1
    %p175 = scmp.eq.s32.totalorder %s13, 1
    %p176 = scmp.ne.s32.totalorder %s171, %s173
    %p177 = scmp.eq.s32.totalorder %s13, 0
    %p178 = por %p176, %p177
    %p179 = scmp.ne.s32.totalorder %s171, %s173
    %p180 = scmp.eq.s32.totalorder %s18, 1
    %p181 = por %p179, %p180
    %p182 = scmp.ne.s32.totalorder %s173, %s174
    %p183 = scmp.eq.s32.totalorder %s18, 0
    %p184 = por %p182, %p183
    %p185 = scmp.ne.s32.totalorder %s173, %s174
    %p186 = scmp.eq.s32.totalorder %s19, 1
    %p187 = por %p185, %p186
    %p189 = scmp.ne.s32.totalorder %s174, %s188
    %p190 = scmp.eq.s32.totalorder %s19, 0
    %p191 = por %p189, %p190
    %s192 = ssub.s32 %s20, %s32
    %p193 = scmp.eq.s32.totalorder %s192, 0
    %s195 = sadd.s32 %s194, 1
    %s196 = scalar_select %p193, %s194, %s195
    %p199 = pneg %p193
    %p200 = scmp.eq.s32.totalorder %s13, 1
    %p201 = por %p199, %p200
    %p202 = scmp.ne.s32.totalorder %s194, %s197
    %p203 = scmp.eq.s32.totalorder %s13, 0
    %p204 = por %p202, %p203
    %p205 = scmp.ne.s32.totalorder %s194, %s197
    %p206 = scmp.eq.s32.totalorder %s18, 1
    %p207 = por %p205, %p206
    %p208 = scmp.ne.s32.totalorder %s197, %s198
    %p209 = scmp.eq.s32.totalorder %s18, 0
    %p210 = por %p208, %p209
    %p211 = scmp.ne.s32.totalorder %s197, %s198
    %p212 = scmp.eq.s32.totalorder %s19, 1
    %p213 = por %p211, %p212
    %p215 = scmp.ne.s32.totalorder %s198, %s214
    %p216 = scmp.eq.s32.totalorder %s19, 0
    %p217 = por %p215, %p216
    %p218 = scmp.le.s32.totalorder 1, %s13
    %p219 = scmp.lt.s32.totalorder %s13, 3
    %p220 = pnand %p218, %p219
    %p221 = pneg %p220
    // Predicated region
    $region9: #{hypanet_forward.1} parent=5 // pred_check
      _
    $region10: #{hypanet_forward.1} parent=5 // pred_check_branch
      %223 = sbr.rel (%p220) target = $region12
    $region11: #{hypanet_forward.1} parent=5 // pred_region
      %s224 = ssub.s32 %s13, 1
      // Predicated region
      $region13: #{hypanet_forward.1} parent=11 // pred_check
        %p225 = pneg %p79
      $region14: #{hypanet_forward.1} parent=11 // pred_check_branch
        %227 = sbr.rel (%p225) target = $region16
      $region15: #{hypanet_forward.1} parent=11 // pred_region
        %s228 = smul.u32 2, %s23
        %p229 = scmp.lt.s32.totalorder %s228, 1
        %s230 = scalar_select %p229, %s228, 1
        %s231 = smul.addr %s230, 2
        %s232 = scalar_lea.vmem %s1, %s231
        %s233 = smul.u32 2, %s23
      $region16: #{hypanet_forward.1} parent=11 // pred_fallthru
        _
      // Predicated region
      $region17: #{hypanet_forward.1} parent=11 // pred_check
        %p234 = pneg %p100
      $region18: #{hypanet_forward.1} parent=11 // pred_check_branch
        %236 = sbr.rel (%p234) target = $region20
      $region19: #{hypanet_forward.1} parent=11 // pred_region
        _
      $region20: #{hypanet_forward.1} parent=11 // pred_fallthru
        _
      // Predicated region
      $region21: #{hypanet_forward.1} parent=11 // pred_check
        %p237 = pneg %p121
      $region22: #{hypanet_forward.1} parent=11 // pred_check_branch
        %239 = sbr.rel (%p237) target = $region24
      $region23: #{hypanet_forward.1} parent=11 // pred_region
        _
      $region24: #{hypanet_forward.1} parent=11 // pred_fallthru
        _
      // Predicated region
      $region25: #{hypanet_forward.1} parent=11 // pred_check
        %p240 = pneg %p142
      $region26: #{hypanet_forward.1} parent=11 // pred_check_branch
        %242 = sbr.rel (%p240) target = $region28
      $region27: #{hypanet_forward.1} parent=11 // pred_region
        _
      $region28: #{hypanet_forward.1} parent=11 // pred_fallthru
        _
      // Predicated region
      $region29: #{hypanet_forward.1} parent=11 // pred_check
        %p243 = pneg %p163
      $region30: #{hypanet_forward.1} parent=11 // pred_check_branch
        %245 = sbr.rel (%p243) target = $region32
      $region31: #{hypanet_forward.1} parent=11 // pred_region
        _
      $region32: #{hypanet_forward.1} parent=11 // pred_fallthru
        _
      // Predicated region
      $region33: #{hypanet_forward.1} parent=11 // pred_check
        %p246 = pneg %p184
      $region34: #{hypanet_forward.1} parent=11 // pred_check_branch
        %248 = sbr.rel (%p246) target = $region36
      $region35: #{hypanet_forward.1} parent=11 // pred_region
        _
      $region36: #{hypanet_forward.1} parent=11 // pred_fallthru
        _
    $region12: #{hypanet_forward.1} parent=5 // pred_fallthru
      _
    %p249 = scmp.lt.s32.totalorder %s13, 2
    // Predicated region
    $region37: #{hypanet_forward.1} parent=5 // pred_check
      %p250 = pneg %p249
    $region38: #{hypanet_forward.1} parent=5 // pred_check_branch
      %252 = sbr.rel (%p250) target = $region40
    $region39: #{hypanet_forward.1} parent=5 // pred_region
      // Predicated region
      $region41: #{hypanet_forward.1} parent=39 // pred_check
        %p253 = pneg %p47
      $region42: #{hypanet_forward.1} parent=39 // pred_check_branch
        %255 = sbr.rel (%p253) target = $region44
      $region43: #{hypanet_forward.1} parent=39 // pred_region
        %s256 = smul.u32 2, %s21
        %p257 = scmp.lt.s32.totalorder %s20, 1
        %s258 = scalar_select %p257, %s20, 1
        %p259 = scmp.lt.s32.totalorder %s256, 1
        %s260 = scalar_select %p259, %s256, 1
        %s261 = smul.addr %s258, 8
        %s262 = sadd.s32 %s260, %s261
        %s263 = smul.addr %s262, 8
        %s264 = scalar_lea.vmem %s0, %s263
        %s265 = smul.u32 2, %s21
      $region44: #{hypanet_forward.1} parent=39 // pred_fallthru
        _
    $region40: #{hypanet_forward.1} parent=5 // pred_fallthru
      _
    %p266 = scmp.le.s32.totalorder 1, %s13
    %p267 = scmp.lt.s32.totalorder %s13, 3
    %p268 = pnand %p266, %p267
    %p269 = pneg %p268
    // Predicated region
    $region45: #{hypanet_forward.1} parent=5 // pred_check
      _
    $region46: #{hypanet_forward.1} parent=5 // pred_check_branch
      %271 = sbr.rel (%p268) target = $region48
    $region47: #{hypanet_forward.1} parent=5 // pred_region
      %s272 = ssub.s32 %s13, 1
      %s273 = smul.u32 2, %s23
      %p274 = scmp.lt.s32.totalorder %s22, 1
      %s275 = scalar_select %p274, %s22, 1
      %p276 = scmp.lt.s32.totalorder %s273, 1
      %s277 = scalar_select %p276, %s273, 1
      %s278 = smul.addr %s275, 8
      %s279 = sadd.s32 %s277, %s278
      %s280 = smul.addr %s279, 8
      %s281 = scalar_lea.vmem %s0, %s280
      %p282 = pneg %p53
      %p283 = pneg %p50
      %s284 = smul.u32 2, %s23
      %p285 = scmp.lt.s32.totalorder %s284, 1
      %s286 = scalar_select %p285, %s284, 1
      %s287 = smul.addr %s286, 2
      %s288 = scalar_lea.vmem %s1, %s287
      %p289 = pneg %p79
      %p290 = pneg %p76
      %p291 = pneg %p100
      %p292 = pneg %p97
      %p293 = pneg %p121
      %p294 = pneg %p118
      %p295 = pneg %p142
      %p296 = pneg %p139
      %p297 = pneg %p163
      %p298 = pneg %p160
      %p299 = pneg %p184
      %p300 = pneg %p181
      %p301 = pneg %p210
      %p302 = pneg %p207
      %p303 = scmp.lt.s32.totalorder %s22, 1
      %s304 = scalar_select %p303, %s22, 1
      %s305 = scalar_lea.vmem %s7, %s304
      %s306 = smul.u32 2, %s23
      %p307 = scmp.lt.s32.totalorder %s22, 1
      %s308 = scalar_select %p307, %s22, 1
      %p309 = scmp.lt.s32.totalorder %s306, 1
      %s310 = scalar_select %p309, %s306, 1
      %s311 = smul.addr %s308, 8
      %s312 = sadd.s32 %s310, %s311
      %s313 = smul.addr %s312, 8
      %s314 = scalar_lea.vmem %s0, %s313
      %s315 = smul.u32 2, %s23
      %s316 = smul.u32 2, %s23
      %p317 = scmp.lt.s32.totalorder %s316, 1
      %s318 = scalar_select %p317, %s316, 1
      %s319 = smul.addr %s318, 2
      %s320 = scalar_lea.vmem %s1, %s319
      %s321 = smul.u32 2, %s23
      %p322 = scmp.lt.s32.totalorder %s22, 1
      %s323 = scalar_select %p322, %s22, 1
      %s324 = scalar_lea.vmem %s7, %s323
      %p325 = scmp.eq.s32.totalorder %s23, 0
      // Predicated region
      $region49: #{hypanet_forward.1} parent=47 // pred_check
        %p326 = pneg %p325
      $region50: #{hypanet_forward.1} parent=47 // pred_check_branch
        %328 = sbr.rel (%p326) target = $region52
      $region51: #{hypanet_forward.1} parent=47 // pred_region
        %vm329 = vcmask 523264
        %330 = vst.msk [vmem:[#allocation2] sm:$0xff] %vm329, 0.0
        %vm331 = vcmask 516096
        %332 = vst.msk [vmem:[#allocation2 + $0x8] sm:$0x1] %vm331, 0.0
      $region52: #{hypanet_forward.1} parent=47 // pred_fallthru
        _
      %v333 = vld [vmem:[%s314] sm:$0xff]
      %v334 = vld [vmem:[%s314 + $0x8] sm:$0xff]
      %v335 = vld [vmem:[%s314 + $0x10] sm:$0xff]
      %v336 = vld [vmem:[%s314 + $0x18] sm:$0xff]
      %v337 = vld [vmem:[%s314 + $0x20] sm:$0xff]
      %v338 = vld [vmem:[%s314 + $0x28] sm:$0xff]
      %v339 = vld [vmem:[%s314 + $0x30] sm:$0x1f]
      %v340 = vld [vmem:[%s314 + $0x38] sm:$0x1f]
      %v341 = vld [vmem:[%s2] sm:$0xff]
      %v342 = vld [vmem:[%s2 + $0x8] sm:$0xff]
      %v343 = vld [vmem:[%s2 + $0x10] sm:$0xff]
      %v344 = vld [vmem:[%s2 + $0x18] sm:$0xff]
      %v345 = vld [vmem:[%s2 + $0x20] sm:$0xff]
      %v346 = vld [vmem:[%s2 + $0x28] sm:$0xff]
      %v347 = vld [vmem:[%s2 + $0x30] sm:$0xff]
      %v348 = vld [vmem:[%s2 + $0x38] sm:$0xff]
      %v349 = vld [vmem:[%s3] sm:$0xff]
      %v350 = vld [vmem:[%s3 + $0x8] sm:$0xff]
      %v351 = vld [vmem:[%s3 + $0x10] sm:$0xff]
      %v352 = vld [vmem:[%s3 + $0x18] sm:$0xff]
      %v353 = vld [vmem:[%s3 + $0x20] sm:$0xff]
      %v354 = vld [vmem:[%s3 + $0x28] sm:$0xff]
      %v355 = vld [vmem:[%s3 + $0x30] sm:$0xff]
      %v356 = vld [vmem:[%s3 + $0x38] sm:$0xff]
      %358 = vset.pattern.permute.xlu0 0
      %359 = vperm.xlu0 %358, %v349
      %v360 = vpop.permute.xlu0 %359
      %363 = vset.pattern.permute.xlu0 0
      %364 = vperm.xlu0 %363, %v350
      %v365 = vpop.permute.xlu0 %364
      %368 = vset.pattern.permute.xlu0 0
      %369 = vperm.xlu0 %368, %v351
      %v370 = vpop.permute.xlu0 %369
      %373 = vset.pattern.permute.xlu0 0
      %374 = vperm.xlu0 %373, %v352
      %v375 = vpop.permute.xlu0 %374
      %378 = vset.pattern.permute.xlu0 0
      %379 = vperm.xlu0 %378, %v353
      %v380 = vpop.permute.xlu0 %379
      %383 = vset.pattern.permute.xlu0 0
      %384 = vperm.xlu0 %383, %v354
      %v385 = vpop.permute.xlu0 %384
      %388 = vset.pattern.permute.xlu0 0
      %389 = vperm.xlu0 %388, %v355
      %v390 = vpop.permute.xlu0 %389
      %393 = vset.pattern.permute.xlu0 0
      %394 = vperm.xlu0 %393, %v356
      %v395 = vpop.permute.xlu0 %394
      %vm397 = vcmask 236544
      %v399 = vsel %vm397, %v341, 0
      %v402 = vsel %vm397, %v342, 0
      %v405 = vsel %vm397, %v343, 0
      %v408 = vsel %vm397, %v344, 0
      %v411 = vsel %vm397, %v345, 0
      %v414 = vsel %vm397, %v346, 0
      %v417 = vsel %vm397, %v347, 0
      %v420 = vsel %vm397, %v348, 0
      %vm422 = vcmask 1044480
      %v424 = vsel %vm422, %v339, 0
      %v427 = vsel %vm422, %v340, 0
      %429 = vmatprep.subr.mxu0 %v334
      %430 = vmatpush1.msra.mxu0 %v333
      %431 = vmatprep.subr.mxu0 %v336
      %432 = vmatpush1.msra.mxu0 %v335
      %433 = vmatprep.subr.mxu0 %v338
      %434 = vmatpush1.msra.mxu0 %v337
      %435 = vmatprep.subr.mxu0 %v427
      %436 = vmatpush1.msra.mxu0 %v424
      %437 = vmatprep.subr.mxu0 0.0
      %438 = vmatpush1.msra.mxu0 0.0
      %439 = vmatprep.subr.mxu0 0.0
      %440 = vmatpush1.msra.mxu0 0.0
      %441 = vmatprep.subr.mxu0 0.0
      %442 = vmatpush1.msra.mxu0 0.0
      %443 = vmatprep.subr.mxu0 0.0
      %444 = vmatpush1.msra.mxu0 0.0
      %445 = vmatprep.subr.mxu0 0.0
      %446 = vmatpush1.msra.mxu0 0.0
      %447 = vmatprep.subr.mxu0 0.0
      %448 = vmatpush1.msra.mxu0 0.0
      %449 = vmatprep.subr.mxu0 0.0
      %450 = vmatpush1.msra.mxu0 0.0
      %451 = vmatprep.subr.mxu0 0.0
      %452 = vmatpush1.msra.mxu0 0.0
      %453 = vmatprep.subr.mxu0 0.0
      %454 = vmatpush1.msra.mxu0 0.0
      %455 = vmatprep.subr.mxu0 0.0
      %456 = vmatpush1.msra.mxu0 0.0
      %457 = vmatprep.subr.mxu0 0.0
      %458 = vmatpush1.msra.mxu0 0.0
      %459 = vmatprep.subr.mxu0 0.0
      %460 = vmatpush1.msra.mxu0 0.0
      %461 = vmatprep.subr.mxu0 0.0
      %462 = vmatpush1.msra.mxu0 0.0
      %463 = vmatprep.subr.mxu0 0.0
      %464 = vmatpush1.msra.mxu0 0.0
      %465 = vmatprep.subr.mxu0 0.0
      %466 = vmatpush1.msra.mxu0 0.0
      %467 = vmatprep.subr.mxu0 0.0
      %468 = vmatpush1.msra.mxu0 0.0
      %469 = vmatprep.subr.mxu0 0.0
      %470 = vmatpush1.msra.mxu0 0.0
      %471 = vmatprep.subr.mxu0 0.0
      %472 = vmatpush1.msra.mxu0 0.0
      %473 = vmatprep.subr.mxu0 0.0
      %474 = vmatpush1.msra.mxu0 0.0
      %475 = vmatprep.subr.mxu0 0.0
      %476 = vmatpush1.msra.mxu0 0.0
      %477 = vmatprep.subr.mxu0 0.0
      %478 = vmatpush1.msra.mxu0 0.0
      %479 = vmatprep.subr.mxu0 0.0
      %480 = vmatpush1.msra.mxu0 0.0
      %481 = vmatprep.subr.mxu0 0.0
      %482 = vmatpush1.msra.mxu0 0.0
      %483 = vmatprep.subr.mxu0 0.0
      %484 = vmatpush1.msra.mxu0 0.0
      %485 = vmatprep.subr.mxu0 0.0
      %486 = vmatpush1.msra.mxu0 0.0
      %487 = vmatprep.subr.mxu0 0.0
      %488 = vmatpush1.msra.mxu0 0.0
      %489 = vmatprep.subr.mxu0 0.0
      %490 = vmatpush1.msra.mxu0 0.0
      %491 = vmatprep.subr.mxu0 0.0
      %492 = vmatpush1.msra.mxu0 0.0
      %493 = vmatprep.mubr.f32.mxu0 0.0
      %494 = vmatmul.mubr.f32.gmra.mrb[0].mxu0 %v399
      %v495 = vpop.f32.mrb[0].mxu0
      %v496 = vadd.f32 %v360, %v495
      %v497 = vpop.f32.mrb[0].mxu0
      %v498 = vadd.f32 %v360, %v497
      %499 = vmatprep.mubr.f32.mxu0 0.0
      %500 = vmatmul.mubr.f32.gmra.mrb[0].mxu0 %v402
      %v501 = vpop.f32.mrb[0].mxu0
      %v502 = vadd.f32 %v365, %v501
      %v503 = vpop.f32.mrb[0].mxu0
      %v504 = vadd.f32 %v365, %v503
      %505 = vmatprep.mubr.f32.mxu0 0.0
      %506 = vmatmul.mubr.f32.gmra.mrb[0].mxu0 %v405
      %v507 = vpop.f32.mrb[0].mxu0
      %v508 = vadd.f32 %v370, %v507
      %v509 = vpop.f32.mrb[0].mxu0
      %v510 = vadd.f32 %v370, %v509
      %511 = vmatprep.mubr.f32.mxu0 0.0
      %512 = vmatmul.mubr.f32.gmra.mrb[0].mxu0 %v408
      %v513 = vpop.f32.mrb[0].mxu0
      %v514 = vadd.f32 %v375, %v513
      %v515 = vpop.f32.mrb[0].mxu0
      %v516 = vadd.f32 %v375, %v515
      %517 = vmatprep.mubr.f32.mxu0 0.0
      %518 = vmatmul.mubr.f32.gmra.mrb[0].mxu0 %v411
      %v519 = vpop.f32.mrb[0].mxu0
      %v520 = vadd.f32 %v380, %v519
      %v521 = vpop.f32.mrb[0].mxu0
      %v522 = vadd.f32 %v380, %v521
      %523 = vmatprep.mubr.f32.mxu0 0.0
      %524 = vmatmul.mubr.f32.gmra.mrb[0].mxu0 %v414
      %v525 = vpop.f32.mrb[0].mxu0
      %v526 = vadd.f32 %v385, %v525
      %v527 = vpop.f32.mrb[0].mxu0
      %v528 = vadd.f32 %v385, %v527
      %529 = vmatprep.mubr.f32.mxu0 0.0
      %530 = vmatmul.mubr.f32.gmra.mrb[0].mxu0 %v417
      %v531 = vpop.f32.mrb[0].mxu0
      %v532 = vadd.f32 %v390, %v531
      %v533 = vpop.f32.mrb[0].mxu0
      %v534 = vadd.f32 %v390, %v533
      %535 = vmatprep.mubr.f32.mxu0 0.0
      %536 = vmatmul.mubr.f32.gmra.mrb[0].mxu0 %v420
      %v537 = vpop.f32.mrb[0].mxu0
      %v538 = vadd.f32 %v395, %v537
      %v539 = vpop.f32.mrb[0].mxu0
      %v540 = vadd.f32 %v395, %v539
      %541 = vdwg.mxu0
      %v542 = vmax.f32 %v496, 0.0
      %v543 = vmax.f32 %v498, 0.0
      %v544 = vmax.f32 %v502, 0.0
      %v545 = vmax.f32 %v504, 0.0
      %v546 = vmax.f32 %v508, 0.0
      %v547 = vmax.f32 %v510, 0.0
      %v548 = vmax.f32 %v514, 0.0
      %v549 = vmax.f32 %v516, 0.0
      %v550 = vmax.f32 %v520, 0.0
      %v551 = vmax.f32 %v522, 0.0
      %v552 = vmax.f32 %v526, 0.0
      %v553 = vmax.f32 %v528, 0.0
      %v554 = vmax.f32 %v532, 0.0
      %v555 = vmax.f32 %v534, 0.0
      %v556 = vmax.f32 %v538, 0.0
      %v557 = vmax.f32 %v540, 0.0
      %v558 = vld [vmem:[%s320] sm:$0xf]
      %v559 = vld [vmem:[%s320 + $0x4] sm:$0x5]
      %v560 = vunpack.c.0.s8 %v558
      %v561 = vunpack.c.1.s8 %v558
      %v562 = vunpack.c.0.s8 %v559
      %v563 = vunpack.c.1.s8 %v559
      %v564 = vcvt.s32.f32 %v560
      %v565 = vcvt.s32.f32 %v561
      %v566 = vcvt.s32.f32 %v562
      %v567 = vcvt.s32.f32 %v563
      %v568 = vld [vmem:[#allocation2] sm:$0xff]
      %v569 = vld [vmem:[#allocation2 + $0x8] sm:$0x1]
      %570 = vmatprep.subr.mxu0 %v543
      %571 = vmatpush1.xpose.msra.mxu0 %v542
      %572 = vmatprep.subr.mxu0 %v545
      %573 = vmatpush1.xpose.msra.mxu0 %v544
      %574 = vmatprep.subr.mxu0 %v547
      %575 = vmatpush1.xpose.msra.mxu0 %v546
      %576 = vmatprep.subr.mxu0 %v549
      %577 = vmatpush1.xpose.msra.mxu0 %v548
      %578 = vmatprep.subr.mxu0 %v551
      %579 = vmatpush1.xpose.msra.mxu0 %v550
      %580 = vmatprep.subr.mxu0 %v553
      %581 = vmatpush1.xpose.msra.mxu0 %v552
      %582 = vmatprep.subr.mxu0 %v555
      %583 = vmatpush1.xpose.msra.mxu0 %v554
      %584 = vmatprep.subr.mxu0 %v557
      %585 = vmatpush1.xpose.msra.mxu0 %v556
      %586 = vmatprep.subr.mxu0 0.0
      %587 = vmatpush1.xpose.msra.mxu0 0.0
      %588 = vmatprep.subr.mxu0 0.0
      %589 = vmatpush1.xpose.msra.mxu0 0.0
      %590 = vmatprep.subr.mxu0 0.0
      %591 = vmatpush1.xpose.msra.mxu0 0.0
      %592 = vmatprep.subr.mxu0 0.0
      %593 = vmatpush1.xpose.msra.mxu0 0.0
      %594 = vmatprep.subr.mxu0 0.0
      %595 = vmatpush1.xpose.msra.mxu0 0.0
      %596 = vmatprep.subr.mxu0 0.0
      %597 = vmatpush1.xpose.msra.mxu0 0.0
      %598 = vmatprep.subr.mxu0 0.0
      %599 = vmatpush1.xpose.msra.mxu0 0.0
      %600 = vmatprep.subr.mxu0 0.0
      %601 = vmatpush1.xpose.msra.mxu0 0.0
      %602 = vmatprep.subr.mxu0 0.0
      %603 = vmatpush1.xpose.msra.mxu0 0.0
      %604 = vmatprep.subr.mxu0 0.0
      %605 = vmatpush1.xpose.msra.mxu0 0.0
      %606 = vmatprep.subr.mxu0 0.0
      %607 = vmatpush1.xpose.msra.mxu0 0.0
      %608 = vmatprep.subr.mxu0 0.0
      %609 = vmatpush1.xpose.msra.mxu0 0.0
      %610 = vmatprep.subr.mxu0 0.0
      %611 = vmatpush1.xpose.msra.mxu0 0.0
      %612 = vmatprep.subr.mxu0 0.0
      %613 = vmatpush1.xpose.msra.mxu0 0.0
      %614 = vmatprep.subr.mxu0 0.0
      %615 = vmatpush1.xpose.msra.mxu0 0.0
      %616 = vmatprep.subr.mxu0 0.0
      %617 = vmatpush1.xpose.msra.mxu0 0.0
      %618 = vmatprep.subr.mxu0 0.0
      %619 = vmatpush1.xpose.msra.mxu0 0.0
      %620 = vmatprep.subr.mxu0 0.0
      %621 = vmatpush1.xpose.msra.mxu0 0.0
      %622 = vmatprep.subr.mxu0 0.0
      %623 = vmatpush1.xpose.msra.mxu0 0.0
      %624 = vmatprep.subr.mxu0 0.0
      %625 = vmatpush1.xpose.msra.mxu0 0.0
      %626 = vmatprep.subr.mxu0 0.0
      %627 = vmatpush1.xpose.msra.mxu0 0.0
      %628 = vmatprep.subr.mxu0 0.0
      %629 = vmatpush1.xpose.msra.mxu0 0.0
      %630 = vmatprep.subr.mxu0 0.0
      %631 = vmatpush1.xpose.msra.mxu0 0.0
      %632 = vmatprep.subr.mxu0 0.0
      %633 = vmatpush1.xpose.msra.mxu0 0.0
      %634 = vmatprep.mubr.f32.mxu0 %v565
      %635 = vmatmul.mubr.f32.gmra.mrb[0].mxu0 %v564
      %v636 = vpop.f32.mrb[0].mxu0
      %v637 = vadd.f32 0.0, %v636
      %v638 = vpop.f32.mrb[0].mxu0
      %639 = vmatprep.mubr.f32.mxu0 %v567
      %640 = vmatmul.mubr.f32.gmra.mrb[0].mxu0 %v566
      %v641 = vpop.f32.mrb[0].mxu0
      %v642 = vadd.f32 0.0, %v641
      %v643 = vpop.f32.mrb[0].mxu0
      %644 = vdwg.mxu0
      %v645 = vadd.f32 %v568, %v637
      %v646 = vadd.f32 %v569, %v642
      %vm647 = vcmask 523264
      %648 = vst.msk [vmem:[#allocation2] sm:$0xff] %vm647, %v645
      %vm649 = vcmask 516096
      %650 = vst.msk [vmem:[#allocation2 + $0x8] sm:$0x1] %vm649, %v646
      // Predicated region
      $region53: #{hypanet_forward.1} parent=47 // pred_check
        %p651 = pneg %p325
      $region54: #{hypanet_forward.1} parent=47 // pred_check_branch
        %653 = sbr.rel (%p651) target = $region56
      $region55: #{hypanet_forward.1} parent=47 // pred_region
        %v654 = vld [vmem:[#allocation2] sm:$0x1]
        %v655 = vlaneseq
        %vm656 = vcmp.ge.s32.totalorder %v655, 0
        %vm657 = vcmp.lt.s32.totalorder %v655, 64
        %vm658 = vmand %vm656, %vm657
        %659 = vst.msk [vmem:[#allocation3] sm:$0x1] %vm658, %v654
        %v660 = vld [vmem:[#allocation2 + $0x1] sm:$0x1]
        %v663 = vunpack.c.l.s4 1966171168
        %v664 = vunpack.c.0.s8 %v663
        %v665 = vlaneseq
        %v666 = vshrl.u32 %v665, 7
        %v667 = vsub.s32 %v664, %v666
        %v668 = vrot.slane %v660, %v667
        %v670 = vunpack.c.l.s4 1966171168
        %v671 = vunpack.c.0.s8 %v670
        %v672 = vlaneseq
        %v673 = vshrl.u32 %v672, 7
        %v674 = vsub.s32 %v671, %v673
        %v675 = vrot.slane %v668, %v674
        %676 = vrot.lane.b32.xlu0 %v675, 64
        %v677 = vpop.permute.xlu0 %676
        %vm679 = vcmp.ge.s32.totalorder %v655, 64
        %vm680 = vcmp.lt.s32.totalorder %v655, 128
        %vm681 = vmand %vm679, %vm680
        %682 = vst.msk [vmem:[#allocation3] sm:$0x1] %vm681, %v677
        %v683 = vld [vmem:[#allocation2 + $0x2] sm:$0x1]
        %684 = vst.msk [vmem:[#allocation3 + $0x1] sm:$0x1] %vm658, %v683
        %v685 = vld [vmem:[#allocation2 + $0x3] sm:$0x1]
        %v688 = vunpack.c.l.s4 1966171168
        %v689 = vunpack.c.0.s8 %v688
        %v690 = vlaneseq
        %v691 = vshrl.u32 %v690, 7
        %v692 = vsub.s32 %v689, %v691
        %v693 = vrot.slane %v685, %v692
        %v695 = vunpack.c.l.s4 1966171168
        %v696 = vunpack.c.0.s8 %v695
        %v697 = vlaneseq
        %v698 = vshrl.u32 %v697, 7
        %v699 = vsub.s32 %v696, %v698
        %v700 = vrot.slane %v693, %v699
        %701 = vrot.lane.b32.xlu0 %v700, 64
        %v702 = vpop.permute.xlu0 %701
        %704 = vst.msk [vmem:[#allocation3 + $0x1] sm:$0x1] %vm681, %v702
        %v705 = vld [vmem:[#allocation2 + $0x4] sm:$0x1]
        %706 = vst.msk [vmem:[#allocation3 + $0x2] sm:$0x1] %vm658, %v705
        %v707 = vld [vmem:[#allocation2 + $0x5] sm:$0x1]
        %v710 = vunpack.c.l.s4 1966171168
        %v711 = vunpack.c.0.s8 %v710
        %v712 = vlaneseq
        %v713 = vshrl.u32 %v712, 7
        %v714 = vsub.s32 %v711, %v713
        %v715 = vrot.slane %v707, %v714
        %v717 = vunpack.c.l.s4 1966171168
        %v718 = vunpack.c.0.s8 %v717
        %v719 = vlaneseq
        %v720 = vshrl.u32 %v719, 7
        %v721 = vsub.s32 %v718, %v720
        %v722 = vrot.slane %v715, %v721
        %723 = vrot.lane.b32.xlu0 %v722, 64
        %v724 = vpop.permute.xlu0 %723
        %726 = vst.msk [vmem:[#allocation3 + $0x2] sm:$0x1] %vm681, %v724
        %v727 = vld [vmem:[#allocation2 + $0x6] sm:$0x1]
        %728 = vst.msk [vmem:[#allocation3 + $0x3] sm:$0x1] %vm658, %v727
        %v729 = vld [vmem:[#allocation2 + $0x7] sm:$0x1]
        %v732 = vunpack.c.l.s4 1966171168
        %v733 = vunpack.c.0.s8 %v732
        %v734 = vlaneseq
        %v735 = vshrl.u32 %v734, 7
        %v736 = vsub.s32 %v733, %v735
        %v737 = vrot.slane %v729, %v736
        %v739 = vunpack.c.l.s4 1966171168
        %v740 = vunpack.c.0.s8 %v739
        %v741 = vlaneseq
        %v742 = vshrl.u32 %v741, 7
        %v743 = vsub.s32 %v740, %v742
        %v744 = vrot.slane %v737, %v743
        %745 = vrot.lane.b32.xlu0 %v744, 64
        %v746 = vpop.permute.xlu0 %745
        %748 = vst.msk [vmem:[#allocation3 + $0x3] sm:$0x1] %vm681, %v746
        %v749 = vld [vmem:[#allocation2 + $0x8] sm:$0x1]
        %750 = vst.msk [vmem:[#allocation3 + $0x4] sm:$0x1] %vm658, %v749
        %v751 = vld [vmem:[#allocation3] sm:$0x1f]
        %v752 = vld [vmem:[%s4] sm:$0xff]
        %v753 = vld [vmem:[%s4 + $0x8] sm:$0xff]
        %v754 = vld [vmem:[%s4 + $0x10] sm:$0xff]
        %v755 = vld [vmem:[%s4 + $0x18] sm:$0xff]
        %v756 = vld [vmem:[%s4 + $0x20] sm:$0xff]
        %v757 = vld [vmem:[%s4 + $0x28] sm:$0xff]
        %v758 = vld [vmem:[%s4 + $0x30] sm:$0xff]
        %v759 = vld [vmem:[%s4 + $0x38] sm:$0xff]
        %v760 = vld [vmem:[%s4 + $0x40] sm:$0xff]
        %v761 = vld [vmem:[%s4 + $0x48] sm:$0xff]
        %v762 = vld [vmem:[%s4 + $0x50] sm:$0xff]
        %v763 = vld [vmem:[%s4 + $0x58] sm:$0xff]
        %v764 = vld [vmem:[%s4 + $0x60] sm:$0xff]
        %v765 = vld [vmem:[%s4 + $0x68] sm:$0xff]
        %v766 = vld [vmem:[%s4 + $0x70] sm:$0xff]
        %v767 = vld [vmem:[%s4 + $0x78] sm:$0xff]
        %v768 = vld [vmem:[%s4 + $0x80] sm:$0xff]
        %v769 = vld [vmem:[%s4 + $0x88] sm:$0xff]
        %v770 = vld [vmem:[%s4 + $0x90] sm:$0xff]
        %v771 = vld [vmem:[%s4 + $0x98] sm:$0xff]
        %v772 = vld [vmem:[%s4 + $0xa0] sm:$0xff]
        %v773 = vld [vmem:[%s4 + $0xa8] sm:$0xff]
        %v774 = vld [vmem:[%s4 + $0xb0] sm:$0xff]
        %v775 = vld [vmem:[%s4 + $0xb8] sm:$0xff]
        %v776 = vld [vmem:[%s4 + $0xc0] sm:$0xff]
        %v777 = vld [vmem:[%s4 + $0xc8] sm:$0xff]
        %v778 = vld [vmem:[%s4 + $0xd0] sm:$0xff]
        %v779 = vld [vmem:[%s4 + $0xd8] sm:$0xff]
        %v780 = vld [vmem:[%s4 + $0xe0] sm:$0xff]
        %v781 = vld [vmem:[%s4 + $0xe8] sm:$0xff]
        %v782 = vld [vmem:[%s4 + $0xf0] sm:$0xff]
        %v783 = vld [vmem:[%s4 + $0xf8] sm:$0xff]
        %v784 = vld [vmem:[%s4 + $0x100] sm:$0xff]
        %v785 = vld [vmem:[%s4 + $0x108] sm:$0xff]
        %v786 = vld [vmem:[%s4 + $0x110] sm:$0xff]
        %v787 = vld [vmem:[%s4 + $0x118] sm:$0xff]
        %v788 = vld [vmem:[%s4 + $0x120] sm:$0xff]
        %v789 = vld [vmem:[%s4 + $0x128] sm:$0xff]
        %v790 = vld [vmem:[%s4 + $0x130] sm:$0xff]
        %v791 = vld [vmem:[%s4 + $0x138] sm:$0xff]
        %v792 = vld [vmem:[%s4 + $0x140] sm:$0xff]
        %v793 = vld [vmem:[%s4 + $0x148] sm:$0xff]
        %v794 = vld [vmem:[%s4 + $0x150] sm:$0xff]
        %v795 = vld [vmem:[%s4 + $0x158] sm:$0xff]
        %v796 = vld [vmem:[%s4 + $0x160] sm:$0xff]
        %v797 = vld [vmem:[%s4 + $0x168] sm:$0xff]
        %v798 = vld [vmem:[%s4 + $0x170] sm:$0xff]
        %v799 = vld [vmem:[%s4 + $0x178] sm:$0xff]
        %v800 = vld [vmem:[%s4 + $0x180] sm:$0xff]
        %v801 = vld [vmem:[%s4 + $0x188] sm:$0xff]
        %v802 = vld [vmem:[%s4 + $0x190] sm:$0xff]
        %v803 = vld [vmem:[%s4 + $0x198] sm:$0xff]
        %v804 = vld [vmem:[%s4 + $0x1a0] sm:$0xff]
        %v805 = vld [vmem:[%s4 + $0x1a8] sm:$0xff]
        %v806 = vld [vmem:[%s4 + $0x1b0] sm:$0xff]
        %v807 = vld [vmem:[%s4 + $0x1b8] sm:$0xff]
        %v808 = vld [vmem:[%s4 + $0x1c0] sm:$0xff]
        %v809 = vld [vmem:[%s4 + $0x1c8] sm:$0xff]
        %v810 = vld [vmem:[%s4 + $0x1d0] sm:$0xff]
        %v811 = vld [vmem:[%s4 + $0x1d8] sm:$0xff]
        %v812 = vld [vmem:[%s4 + $0x1e0] sm:$0xff]
        %v813 = vld [vmem:[%s4 + $0x1e8] sm:$0xff]
        %v814 = vld [vmem:[%s4 + $0x1f0] sm:$0xff]
        %v815 = vld [vmem:[%s4 + $0x1f8] sm:$0xff]
        %v816 = vld [vmem:[%s4 + $0x200] sm:$0xff]
        %v817 = vld [vmem:[%s4 + $0x208] sm:$0xff]
        %v818 = vld [vmem:[%s4 + $0x210] sm:$0xff]
        %v819 = vld [vmem:[%s4 + $0x218] sm:$0xff]
        %v820 = vld [vmem:[%s4 + $0x220] sm:$0xff]
        %v821 = vld [vmem:[%s4 + $0x228] sm:$0xff]
        %v822 = vld [vmem:[%s4 + $0x230] sm:$0xff]
        %v823 = vld [vmem:[%s4 + $0x238] sm:$0xff]
        %v825 = vlaneseq
        %v826 = vshrl.u32 %v825, 7
        %v827 = vsub.s32 0, %v826
        %v828 = vrot.slane %v751, %v827
        %v829 = vlaneseq
        %v830 = vshrl.u32 %v829, 7
        %v831 = vsub.s32 1, %v830
        %v832 = vrot.slane %v751, %v831
        %v833 = vlaneseq
        %v834 = vshrl.u32 %v833, 7
        %v835 = vsub.s32 2, %v834
        %v836 = vrot.slane %v751, %v835
        %v837 = vlaneseq
        %v838 = vshrl.u32 %v837, 7
        %v839 = vsub.s32 3, %v838
        %v840 = vrot.slane %v751, %v839
        %v841 = vlaneseq
        %v842 = vshrl.u32 %v841, 7
        %v843 = vsub.s32 4, %v842
        %v844 = vrot.slane %v751, %v843
        %v849 = vsel %vm647, %v844, 0
        %851 = vmatprep.subr.mxu0 0.0
        %852 = vmatpush1.msra.mxu0 %v752
        %853 = vmatprep.subr.mxu0 0.0
        %854 = vmatpush1.msra.mxu0 %v753
        %855 = vmatprep.subr.mxu0 0.0
        %856 = vmatpush1.msra.mxu0 %v754
        %857 = vmatprep.subr.mxu0 0.0
        %858 = vmatpush1.msra.mxu0 %v755
        %859 = vmatprep.subr.mxu0 0.0
        %860 = vmatpush1.msra.mxu0 %v756
        %861 = vmatprep.subr.mxu0 0.0
        %862 = vmatpush1.msra.mxu0 %v757
        %863 = vmatprep.subr.mxu0 0.0
        %864 = vmatpush1.msra.mxu0 %v758
        %865 = vmatprep.subr.mxu0 0.0
        %866 = vmatpush1.msra.mxu0 %v759
        %867 = vmatprep.subr.mxu0 0.0
        %868 = vmatpush1.msra.mxu0 %v760
        %869 = vmatprep.subr.mxu0 0.0
        %870 = vmatpush1.msra.mxu0 %v761
        %871 = vmatprep.subr.mxu0 0.0
        %872 = vmatpush1.msra.mxu0 %v762
        %873 = vmatprep.subr.mxu0 0.0
        %874 = vmatpush1.msra.mxu0 %v763
        %875 = vmatprep.subr.mxu0 0.0
        %876 = vmatpush1.msra.mxu0 %v764
        %877 = vmatprep.subr.mxu0 0.0
        %878 = vmatpush1.msra.mxu0 %v765
        %879 = vmatprep.subr.mxu0 0.0
        %880 = vmatpush1.msra.mxu0 %v766
        %881 = vmatprep.subr.mxu0 0.0
        %882 = vmatpush1.msra.mxu0 %v767
        %883 = vmatprep.subr.mxu0 0.0
        %884 = vmatpush1.msra.mxu0 %v768
        %885 = vmatprep.subr.mxu0 0.0
        %886 = vmatpush1.msra.mxu0 %v769
        %887 = vmatprep.subr.mxu0 0.0
        %888 = vmatpush1.msra.mxu0 %v770
        %889 = vmatprep.subr.mxu0 0.0
        %890 = vmatpush1.msra.mxu0 %v771
        %891 = vmatprep.subr.mxu0 0.0
        %892 = vmatpush1.msra.mxu0 %v772
        %893 = vmatprep.subr.mxu0 0.0
        %894 = vmatpush1.msra.mxu0 %v773
        %895 = vmatprep.subr.mxu0 0.0
        %896 = vmatpush1.msra.mxu0 %v774
        %897 = vmatprep.subr.mxu0 0.0
        %898 = vmatpush1.msra.mxu0 %v775
        %899 = vmatprep.subr.mxu0 0.0
        %900 = vmatpush1.msra.mxu0 %v776
        %901 = vmatprep.subr.mxu0 0.0
        %902 = vmatpush1.msra.mxu0 %v777
        %903 = vmatprep.subr.mxu0 0.0
        %904 = vmatpush1.msra.mxu0 %v778
        %905 = vmatprep.subr.mxu0 0.0
        %906 = vmatpush1.msra.mxu0 %v779
        %907 = vmatprep.subr.mxu0 0.0
        %908 = vmatpush1.msra.mxu0 %v780
        %909 = vmatprep.subr.mxu0 0.0
        %910 = vmatpush1.msra.mxu0 %v781
        %911 = vmatprep.subr.mxu0 0.0
        %912 = vmatpush1.msra.mxu0 %v782
        %913 = vmatprep.subr.mxu0 0.0
        %914 = vmatpush1.msra.mxu0 %v783
        %915 = vmatprep.mubr.f32.mxu0 %v832
        %916 = vmatmul.mubr.f32.gmra.mrb[0].mxu0 %v828
        %v917 = vpop.f32.mrb[0].mxu0
        %v918 = vadd.f32 0.0, %v917
        %v919 = vpop.f32.mrb[0].mxu0
        %920 = vdwg.mxu0
        %921 = vmatprep.subr.mxu0 0.0
        %922 = vmatpush1.msra.mxu0 %v784
        %923 = vmatprep.subr.mxu0 0.0
        %924 = vmatpush1.msra.mxu0 %v785
        %925 = vmatprep.subr.mxu0 0.0
        %926 = vmatpush1.msra.mxu0 %v786
        %927 = vmatprep.subr.mxu0 0.0
        %928 = vmatpush1.msra.mxu0 %v787
        %929 = vmatprep.subr.mxu0 0.0
        %930 = vmatpush1.msra.mxu0 %v788
        %931 = vmatprep.subr.mxu0 0.0
        %932 = vmatpush1.msra.mxu0 %v789
        %933 = vmatprep.subr.mxu0 0.0
        %934 = vmatpush1.msra.mxu0 %v790
        %935 = vmatprep.subr.mxu0 0.0
        %936 = vmatpush1.msra.mxu0 %v791
        %937 = vmatprep.subr.mxu0 0.0
        %938 = vmatpush1.msra.mxu0 %v792
        %939 = vmatprep.subr.mxu0 0.0
        %940 = vmatpush1.msra.mxu0 %v793
        %941 = vmatprep.subr.mxu0 0.0
        %942 = vmatpush1.msra.mxu0 %v794
        %943 = vmatprep.subr.mxu0 0.0
        %944 = vmatpush1.msra.mxu0 %v795
        %945 = vmatprep.subr.mxu0 0.0
        %946 = vmatpush1.msra.mxu0 %v796
        %947 = vmatprep.subr.mxu0 0.0
        %948 = vmatpush1.msra.mxu0 %v797
        %949 = vmatprep.subr.mxu0 0.0
        %950 = vmatpush1.msra.mxu0 %v798
        %951 = vmatprep.subr.mxu0 0.0
        %952 = vmatpush1.msra.mxu0 %v799
        %953 = vmatprep.subr.mxu0 0.0
        %954 = vmatpush1.msra.mxu0 %v800
        %955 = vmatprep.subr.mxu0 0.0
        %956 = vmatpush1.msra.mxu0 %v801
        %957 = vmatprep.subr.mxu0 0.0
        %958 = vmatpush1.msra.mxu0 %v802
        %959 = vmatprep.subr.mxu0 0.0
        %960 = vmatpush1.msra.mxu0 %v803
        %961 = vmatprep.subr.mxu0 0.0
        %962 = vmatpush1.msra.mxu0 %v804
        %963 = vmatprep.subr.mxu0 0.0
        %964 = vmatpush1.msra.mxu0 %v805
        %965 = vmatprep.subr.mxu0 0.0
        %966 = vmatpush1.msra.mxu0 %v806
        %967 = vmatprep.subr.mxu0 0.0
        %968 = vmatpush1.msra.mxu0 %v807
        %969 = vmatprep.subr.mxu0 0.0
        %970 = vmatpush1.msra.mxu0 %v808
        %971 = vmatprep.subr.mxu0 0.0
        %972 = vmatpush1.msra.mxu0 %v809
        %973 = vmatprep.subr.mxu0 0.0
        %974 = vmatpush1.msra.mxu0 %v810
        %975 = vmatprep.subr.mxu0 0.0
        %976 = vmatpush1.msra.mxu0 %v811
        %977 = vmatprep.subr.mxu0 0.0
        %978 = vmatpush1.msra.mxu0 %v812
        %979 = vmatprep.subr.mxu0 0.0
        %980 = vmatpush1.msra.mxu0 %v813
        %981 = vmatprep.subr.mxu0 0.0
        %982 = vmatpush1.msra.mxu0 %v814
        %983 = vmatprep.subr.mxu0 0.0
        %984 = vmatpush1.msra.mxu0 %v815
        %985 = vmatprep.mubr.f32.mxu0 %v840
        %986 = vmatmul.mubr.f32.gmra.mrb[0].mxu0 %v836
        %v987 = vpop.f32.mrb[0].mxu0
        %v988 = vadd.f32 %v918, %v987
        %v989 = vpop.f32.mrb[0].mxu0
        %990 = vdwg.mxu0
        %991 = vmatprep.subr.mxu0 0.0
        %992 = vmatpush1.msra.mxu0 %v816
        %993 = vmatprep.subr.mxu0 0.0
        %994 = vmatpush1.msra.mxu0 %v817
        %995 = vmatprep.subr.mxu0 0.0
        %996 = vmatpush1.msra.mxu0 %v818
        %997 = vmatprep.subr.mxu0 0.0
        %998 = vmatpush1.msra.mxu0 %v819
        %999 = vmatprep.subr.mxu0 0.0
        %1000 = vmatpush1.msra.mxu0 %v820
        %1001 = vmatprep.subr.mxu0 0.0
        %1002 = vmatpush1.msra.mxu0 %v821
        %1003 = vmatprep.subr.mxu0 0.0
        %1004 = vmatpush1.msra.mxu0 %v822
        %1005 = vmatprep.subr.mxu0 0.0
        %1006 = vmatpush1.msra.mxu0 %v823
        %1007 = vmatprep.subr.mxu0 0.0
        %1008 = vmatpush1.msra.mxu0 0.0
        %1009 = vmatprep.subr.mxu0 0.0
        %1010 = vmatpush1.msra.mxu0 0.0
        %1011 = vmatprep.subr.mxu0 0.0
        %1012 = vmatpush1.msra.mxu0 0.0
        %1013 = vmatprep.subr.mxu0 0.0
        %1014 = vmatpush1.msra.mxu0 0.0
        %1015 = vmatprep.subr.mxu0 0.0
        %1016 = vmatpush1.msra.mxu0 0.0
        %1017 = vmatprep.subr.mxu0 0.0
        %1018 = vmatpush1.msra.mxu0 0.0
        %1019 = vmatprep.subr.mxu0 0.0
        %1020 = vmatpush1.msra.mxu0 0.0
        %1021 = vmatprep.subr.mxu0 0.0
        %1022 = vmatpush1.msra.mxu0 0.0
        %1023 = vmatprep.subr.mxu0 0.0
        %1024 = vmatpush1.msra.mxu0 0.0
        %1025 = vmatprep.subr.mxu0 0.0
        %1026 = vmatpush1.msra.mxu0 0.0
        %1027 = vmatprep.subr.mxu0 0.0
        %1028 = vmatpush1.msra.mxu0 0.0
        %1029 = vmatprep.subr.mxu0 0.0
        %1030 = vmatpush1.msra.mxu0 0.0
        %1031 = vmatprep.subr.mxu0 0.0
        %1032 = vmatpush1.msra.mxu0 0.0
        %1033 = vmatprep.subr.mxu0 0.0
        %1034 = vmatpush1.msra.mxu0 0.0
        %1035 = vmatprep.subr.mxu0 0.0
        %1036 = vmatpush1.msra.mxu0 0.0
        %1037 = vmatprep.subr.mxu0 0.0
        %1038 = vmatpush1.msra.mxu0 0.0
        %1039 = vmatprep.subr.mxu0 0.0
        %1040 = vmatpush1.msra.mxu0 0.0
        %1041 = vmatprep.subr.mxu0 0.0
        %1042 = vmatpush1.msra.mxu0 0.0
        %1043 = vmatprep.subr.mxu0 0.0
        %1044 = vmatpush1.msra.mxu0 0.0
        %1045 = vmatprep.subr.mxu0 0.0
        %1046 = vmatpush1.msra.mxu0 0.0
        %1047 = vmatprep.subr.mxu0 0.0
        %1048 = vmatpush1.msra.mxu0 0.0
        %1049 = vmatprep.subr.mxu0 0.0
        %1050 = vmatpush1.msra.mxu0 0.0
        %1051 = vmatprep.subr.mxu0 0.0
        %1052 = vmatpush1.msra.mxu0 0.0
        %1053 = vmatprep.subr.mxu0 0.0
        %1054 = vmatpush1.msra.mxu0 0.0
        %1055 = vmatprep.mubr.f32.mxu0 0.0
        %1056 = vmatmul.mubr.f32.gmra.mrb[0].mxu0 %v849
        %v1057 = vpop.f32.mrb[0].mxu0
        %v1058 = vadd.f32 %v988, %v1057
        %v1059 = vpop.f32.mrb[0].mxu0
        %1060 = vdwg.mxu0
        %v1061 = vmul.f32 %v1058, 0.015625
        %v1062 = vld [vmem:[%s6] sm:$0x1]
        %v1063 = vadd.f32 %v1061, %v1062
        %v1064 = vld [vmem:[%s5] sm:$0xff]
        %v1065 = vld [vmem:[%s5 + $0x8] sm:$0xff]
        %v1066 = vld [vmem:[%s5 + $0x10] sm:$0xff]
        %v1067 = vld [vmem:[%s5 + $0x18] sm:$0xff]
        %v1068 = vld [vmem:[%s5 + $0x20] sm:$0xff]
        %v1069 = vld [vmem:[%s5 + $0x28] sm:$0xff]
        %v1070 = vld [vmem:[%s5 + $0x30] sm:$0xff]
        %v1071 = vld [vmem:[%s5 + $0x38] sm:$0xff]
        %v1072 = vld [vmem:[%s6 + $0x1] sm:$0x1]
        %v1074 = vsel %vm647, %v1063, 0
        %1076 = vmatprep.subr.mxu0 0.0
        %1077 = vmatpush1.msra.mxu0 %v1064
        %1078 = vmatprep.subr.mxu0 0.0
        %1079 = vmatpush1.msra.mxu0 %v1065
        %1080 = vmatprep.subr.mxu0 0.0
        %1081 = vmatpush1.msra.mxu0 %v1066
        %1082 = vmatprep.subr.mxu0 0.0
        %1083 = vmatpush1.msra.mxu0 %v1067
        %1084 = vmatprep.subr.mxu0 0.0
        %1085 = vmatpush1.msra.mxu0 %v1068
        %1086 = vmatprep.subr.mxu0 0.0
        %1087 = vmatpush1.msra.mxu0 %v1069
        %1088 = vmatprep.subr.mxu0 0.0
        %1089 = vmatpush1.msra.mxu0 %v1070
        %1090 = vmatprep.subr.mxu0 0.0
        %1091 = vmatpush1.msra.mxu0 %v1071
        %1092 = vmatprep.subr.mxu0 0.0
        %1093 = vmatpush1.msra.mxu0 0.0
        %1094 = vmatprep.subr.mxu0 0.0
        %1095 = vmatpush1.msra.mxu0 0.0
        %1096 = vmatprep.subr.mxu0 0.0
        %1097 = vmatpush1.msra.mxu0 0.0
        %1098 = vmatprep.subr.mxu0 0.0
        %1099 = vmatpush1.msra.mxu0 0.0
        %1100 = vmatprep.subr.mxu0 0.0
        %1101 = vmatpush1.msra.mxu0 0.0
        %1102 = vmatprep.subr.mxu0 0.0
        %1103 = vmatpush1.msra.mxu0 0.0
        %1104 = vmatprep.subr.mxu0 0.0
        %1105 = vmatpush1.msra.mxu0 0.0
        %1106 = vmatprep.subr.mxu0 0.0
        %1107 = vmatpush1.msra.mxu0 0.0
        %1108 = vmatprep.subr.mxu0 0.0
        %1109 = vmatpush1.msra.mxu0 0.0
        %1110 = vmatprep.subr.mxu0 0.0
        %1111 = vmatpush1.msra.mxu0 0.0
        %1112 = vmatprep.subr.mxu0 0.0
        %1113 = vmatpush1.msra.mxu0 0.0
        %1114 = vmatprep.subr.mxu0 0.0
        %1115 = vmatpush1.msra.mxu0 0.0
        %1116 = vmatprep.subr.mxu0 0.0
        %1117 = vmatpush1.msra.mxu0 0.0
        %1118 = vmatprep.subr.mxu0 0.0
        %1119 = vmatpush1.msra.mxu0 0.0
        %1120 = vmatprep.subr.mxu0 0.0
        %1121 = vmatpush1.msra.mxu0 0.0
        %1122 = vmatprep.subr.mxu0 0.0
        %1123 = vmatpush1.msra.mxu0 0.0
        %1124 = vmatprep.subr.mxu0 0.0
        %1125 = vmatpush1.msra.mxu0 0.0
        %1126 = vmatprep.subr.mxu0 0.0
        %1127 = vmatpush1.msra.mxu0 0.0
        %1128 = vmatprep.subr.mxu0 0.0
        %1129 = vmatpush1.msra.mxu0 0.0
        %1130 = vmatprep.subr.mxu0 0.0
        %1131 = vmatpush1.msra.mxu0 0.0
        %1132 = vmatprep.subr.mxu0 0.0
        %1133 = vmatpush1.msra.mxu0 0.0
        %1134 = vmatprep.subr.mxu0 0.0
        %1135 = vmatpush1.msra.mxu0 0.0
        %1136 = vmatprep.subr.mxu0 0.0
        %1137 = vmatpush1.msra.mxu0 0.0
        %1138 = vmatprep.subr.mxu0 0.0
        %1139 = vmatpush1.msra.mxu0 0.0
        %1140 = vmatprep.mubr.f32.mxu0 0.0
        %1141 = vmatmul.mubr.f32.gmra.mrb[0].mxu0 %v1074
        %v1142 = vpop.f32.mrb[0].mxu0
        %v1143 = vadd.f32 %v1072, %v1142
        %v1144 = vpop.f32.mrb[0].mxu0
        %1145 = vdwg.mxu0
        %v1146 = vmax.f32 %v1143, 0.0
        %s1147 = scalar_lea.vmem %s5, 64
        %v1148 = vld [vmem:[%s1147] sm:$0xff]
        %v1149 = vld [vmem:[%s1147 + $0x8] sm:$0xff]
        %v1150 = vld [vmem:[%s1147 + $0x10] sm:$0xff]
        %v1151 = vld [vmem:[%s1147 + $0x18] sm:$0xff]
        %v1152 = vld [vmem:[%s1147 + $0x20] sm:$0xff]
        %v1153 = vld [vmem:[%s1147 + $0x28] sm:$0xff]
        %v1154 = vld [vmem:[%s1147 + $0x30] sm:$0xff]
        %v1155 = vld [vmem:[%s1147 + $0x38] sm:$0xff]
        %v1156 = vld [vmem:[%s6 + $0x2] sm:$0x1]
        %v1158 = vsel %vm647, %v1146, 0
        %1160 = vmatprep.subr.mxu0 0.0
        %1161 = vmatpush1.msra.mxu0 %v1148
        %1162 = vmatprep.subr.mxu0 0.0
        %1163 = vmatpush1.msra.mxu0 %v1149
        %1164 = vmatprep.subr.mxu0 0.0
        %1165 = vmatpush1.msra.mxu0 %v1150
        %1166 = vmatprep.subr.mxu0 0.0
        %1167 = vmatpush1.msra.mxu0 %v1151
        %1168 = vmatprep.subr.mxu0 0.0
        %1169 = vmatpush1.msra.mxu0 %v1152
        %1170 = vmatprep.subr.mxu0 0.0
        %1171 = vmatpush1.msra.mxu0 %v1153
        %1172 = vmatprep.subr.mxu0 0.0
        %1173 = vmatpush1.msra.mxu0 %v1154
        %1174 = vmatprep.subr.mxu0 0.0
        %1175 = vmatpush1.msra.mxu0 %v1155
        %1176 = vmatprep.subr.mxu0 0.0
        %1177 = vmatpush1.msra.mxu0 0.0
        %1178 = vmatprep.subr.mxu0 0.0
        %1179 = vmatpush1.msra.mxu0 0.0
        %1180 = vmatprep.subr.mxu0 0.0
        %1181 = vmatpush1.msra.mxu0 0.0
        %1182 = vmatprep.subr.mxu0 0.0
        %1183 = vmatpush1.msra.mxu0 0.0
        %1184 = vmatprep.subr.mxu0 0.0
        %1185 = vmatpush1.msra.mxu0 0.0
        %1186 = vmatprep.subr.mxu0 0.0
        %1187 = vmatpush1.msra.mxu0 0.0
        %1188 = vmatprep.subr.mxu0 0.0
        %1189 = vmatpush1.msra.mxu0 0.0
        %1190 = vmatprep.subr.mxu0 0.0
        %1191 = vmatpush1.msra.mxu0 0.0
        %1192 = vmatprep.subr.mxu0 0.0
        %1193 = vmatpush1.msra.mxu0 0.0
        %1194 = vmatprep.subr.mxu0 0.0
        %1195 = vmatpush1.msra.mxu0 0.0
        %1196 = vmatprep.subr.mxu0 0.0
        %1197 = vmatpush1.msra.mxu0 0.0
        %1198 = vmatprep.subr.mxu0 0.0
        %1199 = vmatpush1.msra.mxu0 0.0
        %1200 = vmatprep.subr.mxu0 0.0
        %1201 = vmatpush1.msra.mxu0 0.0
        %1202 = vmatprep.subr.mxu0 0.0
        %1203 = vmatpush1.msra.mxu0 0.0
        %1204 = vmatprep.subr.mxu0 0.0
        %1205 = vmatpush1.msra.mxu0 0.0
        %1206 = vmatprep.subr.mxu0 0.0
        %1207 = vmatpush1.msra.mxu0 0.0
        %1208 = vmatprep.subr.mxu0 0.0
        %1209 = vmatpush1.msra.mxu0 0.0
        %1210 = vmatprep.subr.mxu0 0.0
        %1211 = vmatpush1.msra.mxu0 0.0
        %1212 = vmatprep.subr.mxu0 0.0
        %1213 = vmatpush1.msra.mxu0 0.0
        %1214 = vmatprep.subr.mxu0 0.0
        %1215 = vmatpush1.msra.mxu0 0.0
        %1216 = vmatprep.subr.mxu0 0.0
        %1217 = vmatpush1.msra.mxu0 0.0
        %1218 = vmatprep.subr.mxu0 0.0
        %1219 = vmatpush1.msra.mxu0 0.0
        %1220 = vmatprep.subr.mxu0 0.0
        %1221 = vmatpush1.msra.mxu0 0.0
        %1222 = vmatprep.subr.mxu0 0.0
        %1223 = vmatpush1.msra.mxu0 0.0
        %1224 = vmatprep.mubr.f32.mxu0 0.0
        %1225 = vmatmul.mubr.f32.gmra.mrb[0].mxu0 %v1158
        %v1226 = vpop.f32.mrb[0].mxu0
        %v1227 = vadd.f32 %v1156, %v1226
        %v1228 = vpop.f32.mrb[0].mxu0
        %1229 = vdwg.mxu0
        %v1230 = vmax.f32 %v1227, 0.0
        %s1231 = scalar_lea.vmem %s5, 128
        %v1232 = vld [vmem:[%s1231] sm:$0xff]
        %v1233 = vld [vmem:[%s1231 + $0x8] sm:$0xff]
        %v1234 = vld [vmem:[%s1231 + $0x10] sm:$0xff]
        %v1235 = vld [vmem:[%s1231 + $0x18] sm:$0xff]
        %v1236 = vld [vmem:[%s1231 + $0x20] sm:$0xff]
        %v1237 = vld [vmem:[%s1231 + $0x28] sm:$0xff]
        %v1238 = vld [vmem:[%s1231 + $0x30] sm:$0xff]
        %v1239 = vld [vmem:[%s1231 + $0x38] sm:$0xff]
        %v1240 = vld [vmem:[%s6 + $0x3] sm:$0x1]
        %v1242 = vsel %vm647, %v1230, 0
        %1244 = vmatprep.subr.mxu0 0.0
        %1245 = vmatpush1.msra.mxu0 %v1232
        %1246 = vmatprep.subr.mxu0 0.0
        %1247 = vmatpush1.msra.mxu0 %v1233
        %1248 = vmatprep.subr.mxu0 0.0
        %1249 = vmatpush1.msra.mxu0 %v1234
        %1250 = vmatprep.subr.mxu0 0.0
        %1251 = vmatpush1.msra.mxu0 %v1235
        %1252 = vmatprep.subr.mxu0 0.0
        %1253 = vmatpush1.msra.mxu0 %v1236
        %1254 = vmatprep.subr.mxu0 0.0
        %1255 = vmatpush1.msra.mxu0 %v1237
        %1256 = vmatprep.subr.mxu0 0.0
        %1257 = vmatpush1.msra.mxu0 %v1238
        %1258 = vmatprep.subr.mxu0 0.0
        %1259 = vmatpush1.msra.mxu0 %v1239
        %1260 = vmatprep.subr.mxu0 0.0
        %1261 = vmatpush1.msra.mxu0 0.0
        %1262 = vmatprep.subr.mxu0 0.0
        %1263 = vmatpush1.msra.mxu0 0.0
        %1264 = vmatprep.subr.mxu0 0.0
        %1265 = vmatpush1.msra.mxu0 0.0
        %1266 = vmatprep.subr.mxu0 0.0
        %1267 = vmatpush1.msra.mxu0 0.0
        %1268 = vmatprep.subr.mxu0 0.0
        %1269 = vmatpush1.msra.mxu0 0.0
        %1270 = vmatprep.subr.mxu0 0.0
        %1271 = vmatpush1.msra.mxu0 0.0
        %1272 = vmatprep.subr.mxu0 0.0
        %1273 = vmatpush1.msra.mxu0 0.0
        %1274 = vmatprep.subr.mxu0 0.0
        %1275 = vmatpush1.msra.mxu0 0.0
        %1276 = vmatprep.subr.mxu0 0.0
        %1277 = vmatpush1.msra.mxu0 0.0
        %1278 = vmatprep.subr.mxu0 0.0
        %1279 = vmatpush1.msra.mxu0 0.0
        %1280 = vmatprep.subr.mxu0 0.0
        %1281 = vmatpush1.msra.mxu0 0.0
        %1282 = vmatprep.subr.mxu0 0.0
        %1283 = vmatpush1.msra.mxu0 0.0
        %1284 = vmatprep.subr.mxu0 0.0
        %1285 = vmatpush1.msra.mxu0 0.0
        %1286 = vmatprep.subr.mxu0 0.0
        %1287 = vmatpush1.msra.mxu0 0.0
        %1288 = vmatprep.subr.mxu0 0.0
        %1289 = vmatpush1.msra.mxu0 0.0
        %1290 = vmatprep.subr.mxu0 0.0
        %1291 = vmatpush1.msra.mxu0 0.0
        %1292 = vmatprep.subr.mxu0 0.0
        %1293 = vmatpush1.msra.mxu0 0.0
        %1294 = vmatprep.subr.mxu0 0.0
        %1295 = vmatpush1.msra.mxu0 0.0
        %1296 = vmatprep.subr.mxu0 0.0
        %1297 = vmatpush1.msra.mxu0 0.0
        %1298 = vmatprep.subr.mxu0 0.0
        %1299 = vmatpush1.msra.mxu0 0.0
        %1300 = vmatprep.subr.mxu0 0.0
        %1301 = vmatpush1.msra.mxu0 0.0
        %1302 = vmatprep.subr.mxu0 0.0
        %1303 = vmatpush1.msra.mxu0 0.0
        %1304 = vmatprep.subr.mxu0 0.0
        %1305 = vmatpush1.msra.mxu0 0.0
        %1306 = vmatprep.subr.mxu0 0.0
        %1307 = vmatpush1.msra.mxu0 0.0
        %1308 = vmatprep.mubr.f32.mxu0 0.0
        %1309 = vmatmul.mubr.f32.gmra.mrb[0].mxu0 %v1242
        %v1310 = vpop.f32.mrb[0].mxu0
        %v1311 = vadd.f32 %v1240, %v1310
        %v1312 = vpop.f32.mrb[0].mxu0
        %1313 = vdwg.mxu0
        %vm1314 = vcmp.gt.f32.partialorder %v1311, 20.0
        %v1315 = vmin.f32 %v1311, 20.0
        %v1316 = vmul.f32 %v1315, 1.442695
        %v1317 = vpow.pop %v1316
        %v1318 = vadd.f32 %v1317, 1.0
        %v1319 = vlog2.pop %v1318
        %v1320 = vmul.f32 %v1319, 0.6931472
        %v1321 = vmul.f32 -0.5, %v1317
        %v1322 = vadd.f32 %v1321, 1.0
        %v1323 = vmul.f32 %v1322, %v1317
        %v1324 = vand.u32 2147483647, %v1317
        %vm1325 = vcmp.lt.f32.partialorder %v1324, 0.0004427343
        %v1326 = vsel %vm1325, %v1323, %v1320
        %v1327 = vsel %vm1314, %v1311, %v1326
        %v1328 = vadd.f32 %v1327, 1e-06
        %vm1329 = vcmask 57344
        %1330 = vst.msk [vmem:[%s324] sm:$0x1] %vm1329, %v1328
      $region56: #{hypanet_forward.1} parent=47 // pred_fallthru
        _
      %p1331 = scmp.lt.s32.totalorder %s22, 1
      %s1332 = scalar_select %p1331, %s22, 1
      %s1333 = scalar_lea.vmem %s7, %s1332
      // Predicated region
      $region57: #{hypanet_forward.1} parent=47 // pred_check
        %p1334 = pneg %p207
      $region58: #{hypanet_forward.1} parent=47 // pred_check_branch
        %1336 = sbr.rel (%p1334) target = $region60
      $region59: #{hypanet_forward.1} parent=47 // pred_region
        _
      $region60: #{hypanet_forward.1} parent=47 // pred_fallthru
        _
    $region48: #{hypanet_forward.1} parent=5 // pred_fallthru
      _
    %p1337 = scmp.le.s32.totalorder 2, %s13
    // Predicated region
    $region61: #{hypanet_forward.1} parent=5 // pred_check
      %p1338 = pneg %p1337
    $region62: #{hypanet_forward.1} parent=5 // pred_check_branch
      %1340 = sbr.rel (%p1338) target = $region64
    $region63: #{hypanet_forward.1} parent=5 // pred_region
      %s1341 = ssub.s32 %s13, 2
      // Predicated region
      $region65: #{hypanet_forward.1} parent=63 // pred_check
        %p1342 = pneg %p213
      $region66: #{hypanet_forward.1} parent=63 // pred_check_branch
        %1344 = sbr.rel (%p1342) target = $region68
      $region67: #{hypanet_forward.1} parent=63 // pred_region
        %p1345 = scmp.lt.s32.totalorder %s24, 1
        %s1346 = scalar_select %p1345, %s24, 1
        %s1347 = scalar_lea.vmem %s7, %s1346
      $region68: #{hypanet_forward.1} parent=63 // pred_fallthru
        _
    $region64: #{hypanet_forward.1} parent=5 // pred_fallthru
      _
  $region6: #{hypanet_forward.1} parent=0 // loop_footer
    %s17 = sadd.s32 1, %s13
  $region7: #{hypanet_forward.1} parent=0 // loop_footer_branch
    %12 = sbr.rel target = $region3
  $region8: #{hypanet_forward.1} parent=0 // loop_exit
    _

</llo_original>
